<compile_context>
chip_gen: v7x
topology: tpu7x:2x2x1
jax: 0.10.0
libtpu: 0.0.40
codegen_flags: <defaults>
</compile_context>

<pallas_src>
import jax
import jax.numpy as jnp
from jax import lax
from jax.experimental import pallas as pl
from jax.experimental.pallas import tpu as pltpu

EPS = 1e-5


# --------------------------------------------------------------------------
# Pass 1: conv1 + BN1 + ReLU + fused theta/phi/g projection (transposed layout)
# --------------------------------------------------------------------------
def proj_kernel(
    x_ref,            # [Bblk, Cin, HW]
    w1_ref,           # [C, Cin]        conv1 weight (PyTorch layout, no transpose)
    s1_ref, b1_ref,   # [C, 1]          folded BN1 scale / shift
    wtpg_ref,         # [3*Ci, C]       fused theta|phi|g conv weights
    btpg_ref,         # [3*Ci, 1]       fused theta|phi|g conv biases
    h_ref,            # [Bblk, C,  HW]  out (f32, needed for residual)
    th_ref,           # [Bblk, Ci, HW]  out (bf16)
    ph_ref,           # [Bblk, Ci, HW]  out (bf16)
    g_ref,            # [Bblk, Ci, HW]  out (bf16)
):
    bblk = x_ref.shape[0]
    ci = th_ref.shape[1]

    w1 = w1_ref[...]
    s1 = s1_ref[...]
    b1 = b1_ref[...]
    wtpg = wtpg_ref[...]
    btpg = btpg_ref[...]

    for bi in range(bblk):  # small static unroll over batch elements in this block
        xb = x_ref[bi]                                                    # [Cin, HW]
        hb = jnp.dot(w1, xb, preferred_element_type=jnp.float32)          # [C, HW]
        hb = jnp.maximum(hb * s1 + b1, 0.0)                               # BN1 + ReLU
        h_ref[bi] = hb

        # single fused projection matmul, then slice rows (multiples of 8 sublanes)
        tpg = jnp.dot(wtpg, hb, preferred_element_type=jnp.float32) + btpg  # [3Ci, HW]
        tpg = tpg.astype(th_ref.dtype)                                      # bf16
        th_ref[bi] = tpg[0 * ci:1 * ci]
        ph_ref[bi] = tpg[1 * ci:2 * ci]
        g_ref[bi] = tpg[2 * ci:3 * ci]


# --------------------------------------------------------------------------
# Pass 2: attention (query-tiled) + W conv + BN_W + residual + conv2
# --------------------------------------------------------------------------
def attn_kernel(
    th_ref,           # [1, Ci, tq]   theta, query tile (bf16)
    ph_ref,           # [1, Ci, HW]   phi, all keys (bf16)
    g_ref,            # [1, Ci, HW]   g,   all keys (bf16)
    h_ref,            # [1, C,  tq]   residual tile (f32)
    ww_ref,           # [C, Ci]       W conv weight
    sw_ref, bw_ref,   # [C, 1]        folded (W bias + BN_W) scale / shift
    w2_ref,           # [1, C]        conv2 weight row
    out_ref,          # [1, 1, tq]    lane-dense output block
):
    theta = th_ref[0]                                                      # [Ci, tq]
    phi = ph_ref[0]                                                        # [Ci, HW]
    g = g_ref[0]                                                           # [Ci, HW]

    # scores f[q, k] = sum_i theta[i, q] * phi[i, k]   (bf16 operands, f32 acc)
    f = lax.dot_general(theta, phi, (((0,), (0,)), ((), ())),
                        preferred_element_type=jnp.float32)                # [tq, HW]
    f = f - jnp.max(f, axis=-1, keepdims=True)
    p = jnp.exp(f)
    p = p * pl.reciprocal(jnp.sum(p, axis=-1, keepdims=True), approx=True)

    # yT[i, q] = sum_k g[i, k] * p[q, k]   (bf16 operands, f32 acc)
    yT = lax.dot_general(g, p.astype(jnp.bfloat16), (((1,), (1,)), ((), ())),
                         preferred_element_type=jnp.float32)               # [Ci, tq]

    # W conv + folded BN_W + residual
    wy = jnp.dot(ww_ref[...], yT, preferred_element_type=jnp.float32)      # [C, tq]
    z = wy * sw_ref[...] + bw_ref[...] + h_ref[0]                          # [C, tq]

    # conv2 as [1, C] @ [C, tq] -> lane-dense [1, tq]
    o = jnp.dot(w2_ref[...], z, preferred_element_type=jnp.float32)        # [1, tq]
    out_ref[0] = o.astype(out_ref.dtype)


# --------------------------------------------------------------------------
# Wrapper
# --------------------------------------------------------------------------
def _pick_bblk(B, max_bblk=4):
    bblk = min(B, max_bblk)
    while B % bblk:
        bblk -= 1
    return bblk


def _pick_tq(HW, max_tq=512):
    # query-tile size: keep [tq, HW] score block bounded; must be a multiple of
    # 128 lanes or equal to HW.
    if HW <= max_tq or HW % 128 != 0:
        return HW
    for cand in (512, 384, 256, 128):
        if cand <= max_tq and HW % cand == 0:
            return cand
    return HW


@jax.jit
def nl_subnet_forward(x_nchw, params):
    B, Cin, H, W = x_nchw.shape
    HW = H * W
    C = params["w1"].shape[0]
    Ci = params["wt"].shape[0]

    # pure reshape of NCHW -- no HBM transpose of the activation
    x_flat = x_nchw.reshape(B, Cin, HW)

    # fold BN1 (conv1 has no bias)
    s1 = params["bn1_gamma"] / jnp.sqrt(params["bn1_var"] + EPS)
    b1 = params["bn1_beta"] - params["bn1_mean"] * s1
    # fold W-branch conv bias + BN_W
    sw = params["bnw_gamma"] / jnp.sqrt(params["bnw_var"] + EPS)
    bw = params["bnw_beta"] + (params["bwc"] - params["bnw_mean"]) * sw

    # fuse theta/phi/g conv weights & biases into one projection
    wtpg = jnp.concatenate([params["wt"], params["wp"], params["wg"]], axis=0)   # [3Ci, C]
    btpg = jnp.concatenate([params["bt"], params["bp"], params["bg"]], axis=0)[:, None]

    s1c, b1c = s1[:, None], b1[:, None]
    swc, bwc = sw[:, None], bw[:, None]

    bblk = _pick_bblk(B)
    tq = _pick_tq(HW)
    nq = HW // tq

    # ---------------- pass 1: projections ----------------
    p1_args = (x_flat, params["w1"], s1c, b1c, wtpg, btpg)

    def whole1(a):
        nd = a.ndim
        return pl.BlockSpec(a.shape, lambda b, _nd=nd: (0,) * _nd)

    h, theta, phi, g = pl.pallas_call(
        proj_kernel,
        out_shape=(
            jax.ShapeDtypeStruct((B, C, HW), jnp.float32),
            jax.ShapeDtypeStruct((B, Ci, HW), jnp.bfloat16),
            jax.ShapeDtypeStruct((B, Ci, HW), jnp.bfloat16),
            jax.ShapeDtypeStruct((B, Ci, HW), jnp.bfloat16),
        ),
        grid=(B // bblk,),
        in_specs=[pl.BlockSpec((bblk, Cin, HW), lambda b: (b, 0, 0))]
        + [whole1(a) for a in p1_args[1:]],
        out_specs=(
            pl.BlockSpec((bblk, C, HW), lambda b: (b, 0, 0)),
            pl.BlockSpec((bblk, Ci, HW), lambda b: (b, 0, 0)),
            pl.BlockSpec((bblk, Ci, HW), lambda b: (b, 0, 0)),
            pl.BlockSpec((bblk, Ci, HW), lambda b: (b, 0, 0)),
        ),
        compiler_params=pltpu.CompilerParams(dimension_semantics=("parallel",)),
    )(*p1_args)

    # ---------------- pass 2: attention + output ----------------
    p2_args = (theta, phi, g, h, params["ww"], swc, bwc, params["w2"])

    def whole2(a):
        nd = a.ndim
        return pl.BlockSpec(a.shape, lambda b, q, _nd=nd: (0,) * _nd)

    # Note: on v7x the grid-invariant weight blocks could additionally use
    # pipeline_mode=pl.Buffered(1) to save VMEM when tq/HW are large.
    out_flat = pl.pallas_call(
        attn_kernel,
        out_shape=jax.ShapeDtypeStruct((B, 1, HW), jnp.float32),
        grid=(B, nq),
        in_specs=[
            pl.BlockSpec((1, Ci, tq), lambda b, q: (b, 0, q)),   # theta query tile
            pl.BlockSpec((1, Ci, HW), lambda b, q: (b, 0, 0)),   # phi (all keys)
            pl.BlockSpec((1, Ci, HW), lambda b, q: (b, 0, 0)),   # g   (all keys)
            pl.BlockSpec((1, C, tq), lambda b, q: (b, 0, q)),    # residual tile
            whole2(params["ww"]),
            whole2(swc),
            whole2(bwc),
            whole2(params["w2"]),
        ],
        out_specs=pl.BlockSpec((1, 1, tq), lambda b, q: (b, 0, q)),
        compiler_params=pltpu.CompilerParams(
            dimension_semantics=("parallel", "parallel")),
    )(*p2_args)

    return out_flat.reshape(B, 1, H, W)


# --------------------------------------------------------------------------
# Plain-JAX reference (NCHW), mirrors the PyTorch forward, for validation
# --------------------------------------------------------------------------
def reference_forward(x, p):
    B, Cin, H, W = x.shape
    Ci = p["wt"].shape[0]
    HW = H * W

    def conv1x1(w, t, bias=None):
        out = jnp.einsum("oc,bchw->bohw", w, t)
        if bias is not None:
            out = out + bias[None, :, None, None]
        return out

    def bn(t, gamma, beta, mean, var):
        return ((t - mean[None, :, None, None])
                / jnp.sqrt(var + EPS)[None, :, None, None]
                * gamma[None, :, None, None] + beta[None, :, None, None])

    h = conv1x1(p["w1"], x)
    h = bn(h, p["bn1_gamma"], p["bn1_beta"], p["bn1_mean"], p["bn1_var"])
    h = jnp.maximum(h, 0.0)

    theta = conv1x1(p["wt"], h, p["bt"]).reshape(B, Ci, HW).transpose(0, 2, 1)
    phi = conv1x1(p["wp"], h, p["bp"]).reshape(B, Ci, HW)
    g = conv1x1(p["wg"], h, p["bg"]).reshape(B, Ci, HW).transpose(0, 2, 1)

    f = jax.nn.softmax(theta @ phi, axis=-1)
    y = (f @ g).transpose(0, 2, 1).reshape(B, Ci, H, W)

    wy = conv1x1(p["ww"], y, p["bwc"])
    wy = bn(wy, p["bnw_gamma"], p["bnw_beta"], p["bnw_mean"], p["bnw_var"])
    z = wy + h
    return conv1x1(p["w2"], z)


if __name__ == "__main__":
    # Small shapes consistent with the module (inplanes->planes->planes//2).
    B, Cin, H, W = 2, 64, 16, 16    # inplanes=64, HW=256
    C, Ci = 32, 16                  # planes=32, inter_channels=planes//2=16

    key = jax.random.PRNGKey(0)
    ks = jax.random.split(key, 19)

    def n(k, shape, scale=0.1):
        return scale * jax.random.normal(k, shape, dtype=jnp.float32)

    # Deterministic synthetic parameters (PyTorch zero-inits BN_W of the
    # non-local block; nonzero values here so the full path is exercised).
    params = dict(
        w1=n(ks[0], (C, Cin)),
        bn1_gamma=1.0 + n(ks[1], (C,)),
        bn1_beta=n(ks[2], (C,)),
        bn1_mean=n(ks[3], (C,)),
        bn1_var=jax.random.uniform(ks[4], (C,), minval=0.5, maxval=1.5, dtype=jnp.float32),
        wt=n(ks[5], (Ci, C)), bt=n(ks[6], (Ci,)),
        wp=n(ks[7], (Ci, C)), bp=n(ks[8], (Ci,)),
        wg=n(ks[9], (Ci, C)), bg=n(ks[10], (Ci,)),
        ww=n(ks[11], (C, Ci)), bwc=n(ks[12], (C,)),
        bnw_gamma=1.0 + n(ks[13], (C,)),
        bnw_beta=n(ks[14], (C,)),
        bnw_mean=n(ks[15], (C,)),
        bnw_var=jax.random.uniform(ks[16], (C,), minval=0.5, maxval=1.5, dtype=jnp.float32),
        w2=n(ks[17], (1, C)),
    )
    x = jax.random.normal(ks[18], (B, Cin, H, W), dtype=jnp.float32)

    out = jax.block_until_ready(nl_subnet_forward(x, params))
    ref = reference_forward(x, params)

    assert out.shape == (B, 1, H, W), out.shape
    max_err = float(jnp.max(jnp.abs(out - ref)))
    # bf16 attention operands + approx reciprocal => slightly loosened tolerance
    assert jnp.allclose(out, ref, atol=1e-2, rtol=1e-2), f"max_err={max_err}"
    print("KERNEL_OK")
</pallas_src>

<mosaic_0001>
module attributes {stable_mosaic.version = 11 : i64} {
  func.func @proj_kernel(%arg0: i32, %arg1: memref<2x64x256xf32, #tpu.memory_space<vmem>>, %arg2: memref<32x64xf32, #tpu.memory_space<vmem>>, %arg3: memref<32x1xf32, #tpu.memory_space<vmem>>, %arg4: memref<32x1xf32, #tpu.memory_space<vmem>>, %arg5: memref<48x32xf32, #tpu.memory_space<vmem>>, %arg6: memref<48x1xf32, #tpu.memory_space<vmem>>, %arg7: memref<2x32x256xf32, #tpu.memory_space<vmem>>, %arg8: memref<2x16x256xbf16, #tpu.memory_space<vmem>>, %arg9: memref<2x16x256xbf16, #tpu.memory_space<vmem>>, %arg10: memref<2x16x256xbf16, #tpu.memory_space<vmem>>) attributes {dimension_semantics = [#tpu.dimension_semantics<parallel>], iteration_bounds = array<i64: 1>, scalar_prefetch = 0 : i64, scratch_operands = 0 : i64, tpu.core_type = #tpu.core_type<tc>, window_params = [{transform_indices = @transform_0, window_bounds = array<i64: 2, 64, 256>}, {pipeline_mode = #tpu.pipeline_mode<synchronous>, transform_indices = @transform_1, window_bounds = array<i64: 32, 64>}, {pipeline_mode = #tpu.pipeline_mode<synchronous>, transform_indices = @transform_2, window_bounds = array<i64: 32, 1>}, {pipeline_mode = #tpu.pipeline_mode<synchronous>, transform_indices = @transform_3, window_bounds = array<i64: 32, 1>}, {pipeline_mode = #tpu.pipeline_mode<synchronous>, transform_indices = @transform_4, window_bounds = array<i64: 48, 32>}, {pipeline_mode = #tpu.pipeline_mode<synchronous>, transform_indices = @transform_5, window_bounds = array<i64: 48, 1>}, {transform_indices = @transform_6, window_bounds = array<i64: 2, 32, 256>}, {transform_indices = @transform_7, window_bounds = array<i64: 2, 16, 256>}, {transform_indices = @transform_8, window_bounds = array<i64: 2, 16, 256>}, {transform_indices = @transform_9, window_bounds = array<i64: 2, 16, 256>}]} {
    %c0 = arith.constant 0 : index
    %c0_0 = arith.constant 0 : index
    %0 = vector.load %arg2[%c0, %c0_0] : memref<32x64xf32, #tpu.memory_space<vmem>>, vector<32x64xf32>
    %c0_1 = arith.constant 0 : index
    %c0_2 = arith.constant 0 : index
    %1 = vector.load %arg3[%c0_1, %c0_2] : memref<32x1xf32, #tpu.memory_space<vmem>>, vector<32x1xf32>
    %c0_3 = arith.constant 0 : index
    %c0_4 = arith.constant 0 : index
    %2 = vector.load %arg4[%c0_3, %c0_4] : memref<32x1xf32, #tpu.memory_space<vmem>>, vector<32x1xf32>
    %c0_5 = arith.constant 0 : index
    %c0_6 = arith.constant 0 : index
    %3 = vector.load %arg5[%c0_5, %c0_6] : memref<48x32xf32, #tpu.memory_space<vmem>>, vector<48x32xf32>
    %c0_7 = arith.constant 0 : index
    %c0_8 = arith.constant 0 : index
    %4 = vector.load %arg6[%c0_7, %c0_8] : memref<48x1xf32, #tpu.memory_space<vmem>>, vector<48x1xf32>
    %c0_9 = arith.constant 0 : index
    %c0_10 = arith.constant 0 : index
    %c0_11 = arith.constant 0 : index
    %5 = vector.load %arg1[%c0_9, %c0_10, %c0_11] : memref<2x64x256xf32, #tpu.memory_space<vmem>>, vector<1x64x256xf32>
    %6 = vector.shape_cast %5 : vector<1x64x256xf32> to vector<64x256xf32>
    %cst = arith.constant dense<0.000000e+00> : vector<32x256xf32>
    %7 = tpu.matmul %0, %6, %cst {dimension_numbers = #tpu.dot_dimension_numbers<[1], [0], [0], [1], [0, 0, 1, 1], [], []>} : vector<32x64xf32>, vector<64x256xf32>, vector<32x256xf32> -> vector<32x256xf32>
    %8 = vector.broadcast %1 : vector<32x1xf32> to vector<32x256xf32>
    %9 = arith.mulf %7, %8 : vector<32x256xf32>
    %10 = vector.broadcast %2 : vector<32x1xf32> to vector<32x256xf32>
    %11 = arith.addf %9, %10 : vector<32x256xf32>
    %cst_12 = arith.constant 0.000000e+00 : f32
    %12 = vector.broadcast %cst_12 : f32 to vector<32x256xf32>
    %13 = arith.maximumf %11, %12 : vector<32x256xf32>
    %c0_13 = arith.constant 0 : index
    %c0_14 = arith.constant 0 : index
    %c0_15 = arith.constant 0 : index
    %14 = vector.load %arg7[%c0_13, %c0_14, %c0_15] : memref<2x32x256xf32, #tpu.memory_space<vmem>>, vector<1x32x256xf32>
    %15 = vector.shape_cast %14 : vector<1x32x256xf32> to vector<32x256xf32>
    %16 = vector.shape_cast %13 : vector<32x256xf32> to vector<1x32x256xf32>
    tpu.vector_store %arg7[%c0_13, %c0_14, %c0_15], %16 {strides = array<i32>} : memref<2x32x256xf32, #tpu.memory_space<vmem>>, vector<1x32x256xf32>,
    %cst_16 = arith.constant dense<0.000000e+00> : vector<48x256xf32>
    %17 = tpu.matmul %3, %13, %cst_16 {dimension_numbers = #tpu.dot_dimension_numbers<[1], [0], [0], [1], [0, 0, 1, 1], [], []>} : vector<48x32xf32>, vector<32x256xf32>, vector<48x256xf32> -> vector<48x256xf32>
    %18 = vector.broadcast %4 : vector<48x1xf32> to vector<48x256xf32>
    %19 = arith.addf %17, %18 : vector<48x256xf32>
    %20 = arith.truncf %19 : vector<48x256xf32> to vector<48x256xbf16>
    %21 = vector.extract_strided_slice %20 {offsets = [0, 0], sizes = [16, 256], strides = [1, 1]} : vector<48x256xbf16> to vector<16x256xbf16>
    %c0_17 = arith.constant 0 : index
    %c0_18 = arith.constant 0 : index
    %c0_19 = arith.constant 0 : index
    %22 = vector.load %arg8[%c0_17, %c0_18, %c0_19] : memref<2x16x256xbf16, #tpu.memory_space<vmem>>, vector<1x16x256xbf16>
    %23 = vector.shape_cast %22 : vector<1x16x256xbf16> to vector<16x256xbf16>
    %24 = vector.shape_cast %21 : vector<16x256xbf16> to vector<1x16x256xbf16>
    tpu.vector_store %arg8[%c0_17, %c0_18, %c0_19], %24 {strides = array<i32>} : memref<2x16x256xbf16, #tpu.memory_space<vmem>>, vector<1x16x256xbf16>,
    %25 = vector.extract_strided_slice %20 {offsets = [16, 0], sizes = [16, 256], strides = [1, 1]} : vector<48x256xbf16> to vector<16x256xbf16>
    %c0_20 = arith.constant 0 : index
    %c0_21 = arith.constant 0 : index
    %c0_22 = arith.constant 0 : index
    %26 = vector.load %arg9[%c0_20, %c0_21, %c0_22] : memref<2x16x256xbf16, #tpu.memory_space<vmem>>, vector<1x16x256xbf16>
    %27 = vector.shape_cast %26 : vector<1x16x256xbf16> to vector<16x256xbf16>
    %28 = vector.shape_cast %25 : vector<16x256xbf16> to vector<1x16x256xbf16>
    tpu.vector_store %arg9[%c0_20, %c0_21, %c0_22], %28 {strides = array<i32>} : memref<2x16x256xbf16, #tpu.memory_space<vmem>>, vector<1x16x256xbf16>,
    %29 = vector.extract_strided_slice %20 {offsets = [32, 0], sizes = [16, 256], strides = [1, 1]} : vector<48x256xbf16> to vector<16x256xbf16>
    %c0_23 = arith.constant 0 : index
    %c0_24 = arith.constant 0 : index
    %c0_25 = arith.constant 0 : index
    %30 = vector.load %arg10[%c0_23, %c0_24, %c0_25] : memref<2x16x256xbf16, #tpu.memory_space<vmem>>, vector<1x16x256xbf16>
    %31 = vector.shape_cast %30 : vector<1x16x256xbf16> to vector<16x256xbf16>
    %32 = vector.shape_cast %29 : vector<16x256xbf16> to vector<1x16x256xbf16>
    tpu.vector_store %arg10[%c0_23, %c0_24, %c0_25], %32 {strides = array<i32>} : memref<2x16x256xbf16, #tpu.memory_space<vmem>>, vector<1x16x256xbf16>,
    %c1 = arith.constant 1 : index
    %c0_26 = arith.constant 0 : index
    %c0_27 = arith.constant 0 : index
    %33 = vector.load %arg1[%c1, %c0_26, %c0_27] : memref<2x64x256xf32, #tpu.memory_space<vmem>>, vector<1x64x256xf32>
    %34 = vector.shape_cast %33 : vector<1x64x256xf32> to vector<64x256xf32>
    %cst_28 = arith.constant dense<0.000000e+00> : vector<32x256xf32>
    %35 = tpu.matmul %0, %34, %cst_28 {dimension_numbers = #tpu.dot_dimension_numbers<[1], [0], [0], [1], [0, 0, 1, 1], [], []>} : vector<32x64xf32>, vector<64x256xf32>, vector<32x256xf32> -> vector<32x256xf32>
    %36 = vector.broadcast %1 : vector<32x1xf32> to vector<32x256xf32>
    %37 = arith.mulf %35, %36 : vector<32x256xf32>
    %38 = vector.broadcast %2 : vector<32x1xf32> to vector<32x256xf32>
    %39 = arith.addf %37, %38 : vector<32x256xf32>
    %cst_29 = arith.constant 0.000000e+00 : f32
    %40 = vector.broadcast %cst_29 : f32 to vector<32x256xf32>
    %41 = arith.maximumf %39, %40 : vector<32x256xf32>
    %c1_30 = arith.constant 1 : index
    %c0_31 = arith.constant 0 : index
    %c0_32 = arith.constant 0 : index
    %42 = vector.load %arg7[%c1_30, %c0_31, %c0_32] : memref<2x32x256xf32, #tpu.memory_space<vmem>>, vector<1x32x256xf32>
    %43 = vector.shape_cast %42 : vector<1x32x256xf32> to vector<32x256xf32>
    %44 = vector.shape_cast %41 : vector<32x256xf32> to vector<1x32x256xf32>
    tpu.vector_store %arg7[%c1_30, %c0_31, %c0_32], %44 {strides = array<i32>} : memref<2x32x256xf32, #tpu.memory_space<vmem>>, vector<1x32x256xf32>,
    %cst_33 = arith.constant dense<0.000000e+00> : vector<48x256xf32>
    %45 = tpu.matmul %3, %41, %cst_33 {dimension_numbers = #tpu.dot_dimension_numbers<[1], [0], [0], [1], [0, 0, 1, 1], [], []>} : vector<48x32xf32>, vector<32x256xf32>, vector<48x256xf32> -> vector<48x256xf32>
    %46 = vector.broadcast %4 : vector<48x1xf32> to vector<48x256xf32>
    %47 = arith.addf %45, %46 : vector<48x256xf32>
    %48 = arith.truncf %47 : vector<48x256xf32> to vector<48x256xbf16>
    %49 = vector.extract_strided_slice %48 {offsets = [0, 0], sizes = [16, 256], strides = [1, 1]} : vector<48x256xbf16> to vector<16x256xbf16>
    %c1_34 = arith.constant 1 : index
    %c0_35 = arith.constant 0 : index
    %c0_36 = arith.constant 0 : index
    %50 = vector.load %arg8[%c1_34, %c0_35, %c0_36] : memref<2x16x256xbf16, #tpu.memory_space<vmem>>, vector<1x16x256xbf16>
    %51 = vector.shape_cast %50 : vector<1x16x256xbf16> to vector<16x256xbf16>
    %52 = vector.shape_cast %49 : vector<16x256xbf16> to vector<1x16x256xbf16>
    tpu.vector_store %arg8[%c1_34, %c0_35, %c0_36], %52 {strides = array<i32>} : memref<2x16x256xbf16, #tpu.memory_space<vmem>>, vector<1x16x256xbf16>,
    %53 = vector.extract_strided_slice %48 {offsets = [16, 0], sizes = [16, 256], strides = [1, 1]} : vector<48x256xbf16> to vector<16x256xbf16>
    %c1_37 = arith.constant 1 : index
    %c0_38 = arith.constant 0 : index
    %c0_39 = arith.constant 0 : index
    %54 = vector.load %arg9[%c1_37, %c0_38, %c0_39] : memref<2x16x256xbf16, #tpu.memory_space<vmem>>, vector<1x16x256xbf16>
    %55 = vector.shape_cast %54 : vector<1x16x256xbf16> to vector<16x256xbf16>
    %56 = vector.shape_cast %53 : vector<16x256xbf16> to vector<1x16x256xbf16>
    tpu.vector_store %arg9[%c1_37, %c0_38, %c0_39], %56 {strides = array<i32>} : memref<2x16x256xbf16, #tpu.memory_space<vmem>>, vector<1x16x256xbf16>,
    %57 = vector.extract_strided_slice %48 {offsets = [32, 0], sizes = [16, 256], strides = [1, 1]} : vector<48x256xbf16> to vector<16x256xbf16>
    %c1_40 = arith.constant 1 : index
    %c0_41 = arith.constant 0 : index
    %c0_42 = arith.constant 0 : index
    %58 = vector.load %arg10[%c1_40, %c0_41, %c0_42] : memref<2x16x256xbf16, #tpu.memory_space<vmem>>, vector<1x16x256xbf16>
    %59 = vector.shape_cast %58 : vector<1x16x256xbf16> to vector<16x256xbf16>
    %60 = vector.shape_cast %57 : vector<16x256xbf16> to vector<1x16x256xbf16>
    tpu.vector_store %arg10[%c1_40, %c0_41, %c0_42], %60 {strides = array<i32>} : memref<2x16x256xbf16, #tpu.memory_space<vmem>>, vector<1x16x256xbf16>,
    return
  }
  func.func @transform_0(%arg0: i32) -> (i32, i32, i32) {
    %c0_i32 = arith.constant 0 : i32
    %c0_i32_0 = arith.constant 0 : i32
    %c0_i32_1 = arith.constant 0 : i32
    return %arg0, %c0_i32, %c0_i32_0 : i32, i32, i32
  }
  func.func @transform_1(%arg0: i32) -> (i32, i32) {
    %c0_i32 = arith.constant 0 : i32
    %c0_i32_0 = arith.constant 0 : i32
    %c0_i32_1 = arith.constant 0 : i32
    return %c0_i32, %c0_i32_0 : i32, i32
  }
  func.func @transform_2(%arg0: i32) -> (i32, i32) {
    %c0_i32 = arith.constant 0 : i32
    %c0_i32_0 = arith.constant 0 : i32
    %c0_i32_1 = arith.constant 0 : i32
    return %c0_i32, %c0_i32_0 : i32, i32
  }
  func.func @transform_3(%arg0: i32) -> (i32, i32) {
    %c0_i32 = arith.constant 0 : i32
    %c0_i32_0 = arith.constant 0 : i32
    %c0_i32_1 = arith.constant 0 : i32
    return %c0_i32, %c0_i32_0 : i32, i32
  }
  func.func @transform_4(%arg0: i32) -> (i32, i32) {
    %c0_i32 = arith.constant 0 : i32
    %c0_i32_0 = arith.constant 0 : i32
    %c0_i32_1 = arith.constant 0 : i32
    return %c0_i32, %c0_i32_0 : i32, i32
  }
  func.func @transform_5(%arg0: i32) -> (i32, i32) {
    %c0_i32 = arith.constant 0 : i32
    %c0_i32_0 = arith.constant 0 : i32
    %c0_i32_1 = arith.constant 0 : i32
    return %c0_i32, %c0_i32_0 : i32, i32
  }
  func.func @transform_6(%arg0: i32) -> (i32, i32, i32) {
    %c0_i32 = arith.constant 0 : i32
    %c0_i32_0 = arith.constant 0 : i32
    %c0_i32_1 = arith.constant 0 : i32
    return %arg0, %c0_i32, %c0_i32_0 : i32, i32, i32
  }
  func.func @transform_7(%arg0: i32) -> (i32, i32, i32) {
    %c0_i32 = arith.constant 0 : i32
    %c0_i32_0 = arith.constant 0 : i32
    %c0_i32_1 = arith.constant 0 : i32
    return %arg0, %c0_i32, %c0_i32_0 : i32, i32, i32
  }
  func.func @transform_8(%arg0: i32) -> (i32, i32, i32) {
    %c0_i32 = arith.constant 0 : i32
    %c0_i32_0 = arith.constant 0 : i32
    %c0_i32_1 = arith.constant 0 : i32
    return %arg0, %c0_i32, %c0_i32_0 : i32, i32, i32
  }
  func.func @transform_9(%arg0: i32) -> (i32, i32, i32) {
    %c0_i32 = arith.constant 0 : i32
    %c0_i32_0 = arith.constant 0 : i32
    %c0_i32_1 = arith.constant 0 : i32
    return %arg0, %c0_i32, %c0_i32_0 : i32, i32, i32
  }
}

module attributes {stable_mosaic.version = 11 : i64} {
  func.func @attn_kernel(%arg0: i32, %arg1: i32, %arg2: memref<1x16x256xbf16, #tpu.memory_space<vmem>>, %arg3: memref<1x16x256xbf16, #tpu.memory_space<vmem>>, %arg4: memref<1x16x256xbf16, #tpu.memory_space<vmem>>, %arg5: memref<1x32x256xf32, #tpu.memory_space<vmem>>, %arg6: memref<32x16xf32, #tpu.memory_space<vmem>>, %arg7: memref<32x1xf32, #tpu.memory_space<vmem>>, %arg8: memref<32x1xf32, #tpu.memory_space<vmem>>, %arg9: memref<1x32xf32, #tpu.memory_space<vmem>>, %arg10: memref<1x1x256xf32, #tpu.memory_space<vmem>>) attributes {dimension_semantics = [#tpu.dimension_semantics<parallel>, #tpu.dimension_semantics<parallel>], iteration_bounds = array<i64: 2, 1>, scalar_prefetch = 0 : i64, scratch_operands = 0 : i64, tpu.core_type = #tpu.core_type<tc>, window_params = [{transform_indices = @transform_0, window_bounds = array<i64: 1, 16, 256>}, {transform_indices = @transform_1, window_bounds = array<i64: 1, 16, 256>}, {transform_indices = @transform_2, window_bounds = array<i64: 1, 16, 256>}, {transform_indices = @transform_3, window_bounds = array<i64: 1, 32, 256>}, {pipeline_mode = #tpu.pipeline_mode<synchronous>, transform_indices = @transform_4, window_bounds = array<i64: 32, 16>}, {pipeline_mode = #tpu.pipeline_mode<synchronous>, transform_indices = @transform_5, window_bounds = array<i64: 32, 1>}, {pipeline_mode = #tpu.pipeline_mode<synchronous>, transform_indices = @transform_6, window_bounds = array<i64: 32, 1>}, {pipeline_mode = #tpu.pipeline_mode<synchronous>, transform_indices = @transform_7, window_bounds = array<i64: 1, 32>}, {transform_indices = @transform_8, window_bounds = array<i64: 1, 1, 256>}]} {
    %c0 = arith.constant 0 : index
    %c0_0 = arith.constant 0 : index
    %c0_1 = arith.constant 0 : index
    %0 = vector.load %arg2[%c0, %c0_0, %c0_1] : memref<1x16x256xbf16, #tpu.memory_space<vmem>>, vector<1x16x256xbf16>
    %1 = vector.shape_cast %0 : vector<1x16x256xbf16> to vector<16x256xbf16>
    %c0_2 = arith.constant 0 : index
    %c0_3 = arith.constant 0 : index
    %c0_4 = arith.constant 0 : index
    %2 = vector.load %arg3[%c0_2, %c0_3, %c0_4] : memref<1x16x256xbf16, #tpu.memory_space<vmem>>, vector<1x16x256xbf16>
    %3 = vector.shape_cast %2 : vector<1x16x256xbf16> to vector<16x256xbf16>
    %c0_5 = arith.constant 0 : index
    %c0_6 = arith.constant 0 : index
    %c0_7 = arith.constant 0 : index
    %4 = vector.load %arg4[%c0_5, %c0_6, %c0_7] : memref<1x16x256xbf16, #tpu.memory_space<vmem>>, vector<1x16x256xbf16>
    %5 = vector.shape_cast %4 : vector<1x16x256xbf16> to vector<16x256xbf16>
    %cst = arith.constant dense<0.000000e+00> : vector<256x256xf32>
    %6 = tpu.matmul %1, %3, %cst {dimension_numbers = #tpu.dot_dimension_numbers<[0], [0], [1], [1], [0, 1, 1, 1], [], []>} : vector<16x256xbf16>, vector<16x256xbf16>, vector<256x256xf32> -> vector<256x256xf32>
    %cst_8 = arith.constant dense<0xFF800000> : vector<256xf32>
    %7 = vector.multi_reduction <maximumf>, %6, %cst_8 [1] : vector<256x256xf32> to vector<256xf32>
    %8 = vector.shape_cast %7 : vector<256xf32> to vector<256x1xf32>
    %9 = vector.broadcast %8 : vector<256x1xf32> to vector<256x256xf32>
    %10 = arith.subf %6, %9 : vector<256x256xf32>
    %11 = math.exp %10 : vector<256x256xf32>
    %cst_9 = arith.constant dense<0.000000e+00> : vector<256xf32>
    %12 = vector.multi_reduction <add>, %11, %cst_9 [1] : vector<256x256xf32> to vector<256xf32>
    %13 = vector.shape_cast %12 : vector<256xf32> to vector<256x1xf32>
    %14 = tpu.reciprocal %13 {approx = true} : vector<256x1xf32> -> vector<256x1xf32>
    %15 = vector.broadcast %14 : vector<256x1xf32> to vector<256x256xf32>
    %16 = arith.mulf %11, %15 : vector<256x256xf32>
    %17 = arith.truncf %16 : vector<256x256xf32> to vector<256x256xbf16>
    %cst_10 = arith.constant dense<0.000000e+00> : vector<16x256xf32>
    %18 = tpu.matmul %5, %17, %cst_10 {dimension_numbers = #tpu.dot_dimension_numbers<[1], [1], [0], [0], [0, 0, 1, 0], [], []>} : vector<16x256xbf16>, vector<256x256xbf16>, vector<16x256xf32> -> vector<16x256xf32>
    %c0_11 = arith.constant 0 : index
    %c0_12 = arith.constant 0 : index
    %19 = vector.load %arg6[%c0_11, %c0_12] : memref<32x16xf32, #tpu.memory_space<vmem>>, vector<32x16xf32>
    %cst_13 = arith.constant dense<0.000000e+00> : vector<32x256xf32>
    %20 = tpu.matmul %19, %18, %cst_13 {dimension_numbers = #tpu.dot_dimension_numbers<[1], [0], [0], [1], [0, 0, 1, 1], [], []>} : vector<32x16xf32>, vector<16x256xf32>, vector<32x256xf32> -> vector<32x256xf32>
    %c0_14 = arith.constant 0 : index
    %c0_15 = arith.constant 0 : index
    %21 = vector.load %arg7[%c0_14, %c0_15] : memref<32x1xf32, #tpu.memory_space<vmem>>, vector<32x1xf32>
    %22 = vector.broadcast %21 : vector<32x1xf32> to vector<32x256xf32>
    %23 = arith.mulf %20, %22 : vector<32x256xf32>
    %c0_16 = arith.constant 0 : index
    %c0_17 = arith.constant 0 : index
    %24 = vector.load %arg8[%c0_16, %c0_17] : memref<32x1xf32, #tpu.memory_space<vmem>>, vector<32x1xf32>
    %25 = vector.broadcast %24 : vector<32x1xf32> to vector<32x256xf32>
    %26 = arith.addf %23, %25 : vector<32x256xf32>
    %c0_18 = arith.constant 0 : index
    %c0_19 = arith.constant 0 : index
    %c0_20 = arith.constant 0 : index
    %27 = vector.load %arg5[%c0_18, %c0_19, %c0_20] : memref<1x32x256xf32, #tpu.memory_space<vmem>>, vector<1x32x256xf32>
    %28 = vector.shape_cast %27 : vector<1x32x256xf32> to vector<32x256xf32>
    %29 = arith.addf %26, %28 : vector<32x256xf32>
    %c0_21 = arith.constant 0 : index
    %c0_22 = arith.constant 0 : index
    %30 = vector.load %arg9[%c0_21, %c0_22] : memref<1x32xf32, #tpu.memory_space<vmem>>, vector<1x32xf32>
    %cst_23 = arith.constant dense<0.000000e+00> : vector<1x256xf32>
    %31 = tpu.matmul %30, %29, %cst_23 {dimension_numbers = #tpu.dot_dimension_numbers<[1], [0], [0], [1], [0, 0, 1, 1], [], []>} : vector<1x32xf32>, vector<32x256xf32>, vector<1x256xf32> -> vector<1x256xf32>
    %c0_24 = arith.constant 0 : index
    %c0_25 = arith.constant 0 : index
    %c0_26 = arith.constant 0 : index
    %32 = vector.load %arg10[%c0_24, %c0_25, %c0_26] : memref<1x1x256xf32, #tpu.memory_space<vmem>>, vector<1x1x256xf32>
    %33 = vector.shape_cast %32 : vector<1x1x256xf32> to vector<1x256xf32>
    %34 = vector.shape_cast %31 : vector<1x256xf32> to vector<1x1x256xf32>
    tpu.vector_store %arg10[%c0_24, %c0_25, %c0_26], %34 {strides = array<i32>} : memref<1x1x256xf32, #tpu.memory_space<vmem>>, vector<1x1x256xf32>,
    return
  }
  func.func @transform_0(%arg0: i32, %arg1: i32) -> (i32, i32, i32) {
    %c0_i32 = arith.constant 0 : i32
    %c0_i32_0 = arith.constant 0 : i32
    return %arg0, %c0_i32, %arg1 : i32, i32, i32
  }
  func.func @transform_1(%arg0: i32, %arg1: i32) -> (i32, i32, i32) {
    %c0_i32 = arith.constant 0 : i32
    %c0_i32_0 = arith.constant 0 : i32
    %c0_i32_1 = arith.constant 0 : i32
    return %arg0, %c0_i32, %c0_i32_0 : i32, i32, i32
  }
  func.func @transform_2(%arg0: i32, %arg1: i32) -> (i32, i32, i32) {
    %c0_i32 = arith.constant 0 : i32
    %c0_i32_0 = arith.constant 0 : i32
    %c0_i32_1 = arith.constant 0 : i32
    return %arg0, %c0_i32, %c0_i32_0 : i32, i32, i32
  }
  func.func @transform_3(%arg0: i32, %arg1: i32) -> (i32, i32, i32) {
    %c0_i32 = arith.constant 0 : i32
    %c0_i32_0 = arith.constant 0 : i32
    return %arg0, %c0_i32, %arg1 : i32, i32, i32
  }
  func.func @transform_4(%arg0: i32, %arg1: i32) -> (i32, i32) {
    %c0_i32 = arith.constant 0 : i32
    %c0_i32_0 = arith.constant 0 : i32
    %c0_i32_1 = arith.constant 0 : i32
    return %c0_i32, %c0_i32_0 : i32, i32
  }
  func.func @transform_5(%arg0: i32, %arg1: i32) -> (i32, i32) {
    %c0_i32 = arith.constant 0 : i32
    %c0_i32_0 = arith.constant 0 : i32
    %c0_i32_1 = arith.constant 0 : i32
    return %c0_i32, %c0_i32_0 : i32, i32
  }
  func.func @transform_6(%arg0: i32, %arg1: i32) -> (i32, i32) {
    %c0_i32 = arith.constant 0 : i32
    %c0_i32_0 = arith.constant 0 : i32
    %c0_i32_1 = arith.constant 0 : i32
    return %c0_i32, %c0_i32_0 : i32, i32
  }
  func.func @transform_7(%arg0: i32, %arg1: i32) -> (i32, i32) {
    %c0_i32 = arith.constant 0 : i32
    %c0_i32_0 = arith.constant 0 : i32
    %c0_i32_1 = arith.constant 0 : i32
    return %c0_i32, %c0_i32_0 : i32, i32
  }
  func.func @transform_8(%arg0: i32, %arg1: i32) -> (i32, i32, i32) {
    %c0_i32 = arith.constant 0 : i32
    %c0_i32_0 = arith.constant 0 : i32
    return %arg0, %c0_i32, %arg1 : i32, i32, i32
  }
}

</mosaic_0001>

<llo_original>
// kernel: nl_subnet_forward.2
$region0: #{nl_subnet_forward.2}
  #allocation0 [shape = 'u32[]', space=smem, size = 0x4, offset = 0x4, fixed_abs, tag = 'smem constant byte address 0x4 - core index']
  #allocation1 [shape = 'u32[144,128]{1,0:T(1,128)}', space=vmem, size = 0x12000, scoped, tag = 'internal scratch']
  %s0 = inlined_call_operand.vmem [shape: f32[2,64,256], index: 0, kind: input, shape index: {}]
  %s1 = inlined_call_operand.vmem [shape: f32[32,64], index: 1, kind: input, shape index: {}]
  %s2 = inlined_call_operand.vmem [shape: f32[32,1], index: 2, kind: input, shape index: {}]
  %s3 = inlined_call_operand.vmem [shape: f32[32,1], index: 3, kind: input, shape index: {}]
  %s4 = inlined_call_operand.vmem [shape: f32[48,32], index: 4, kind: input, shape index: {}]
  %s5 = inlined_call_operand.vmem [shape: f32[48,1], index: 5, kind: input, shape index: {}]
  %s6 = inlined_call_operand.vmem [shape: f32[2,32,256], index: 6, kind: output, shape index: {0}]
  %s7 = inlined_call_operand.vmem [shape: bf16[2,16,256], index: 7, kind: output, shape index: {1}]
  %s8 = inlined_call_operand.vmem [shape: bf16[2,16,256], index: 8, kind: output, shape index: {2}]
  %s9 = inlined_call_operand.vmem [shape: bf16[2,16,256], index: 9, kind: output, shape index: {3}]
  %10 = xla_tuple %s6, %s7, %s8, %s9
  %s11 = sld [smem:[#allocation0]]
  $region58: #{nl_subnet_forward.2} parent=0
    _
  %s13 = ssub.s32 1, %s11
  %s14 = scalar_select 0, %s13, %s11
  // Predicated region
  $region2: #{nl_subnet_forward.2} parent=0 // pred_check
    _
  $region3: #{nl_subnet_forward.2} parent=0 // pred_check_branch
    %16 = sbr.rel (0) target = $region5
  $region4: #{nl_subnet_forward.2} parent=0 // pred_region
    _
  $region5: #{nl_subnet_forward.2} parent=0 // pred_fallthru
    _
  // Predicated region
  $region6: #{nl_subnet_forward.2} parent=0 // pred_check
    _
  $region7: #{nl_subnet_forward.2} parent=0 // pred_check_branch
    %18 = sbr.rel (0) target = $region9
  $region8: #{nl_subnet_forward.2} parent=0 // pred_region
    _
  $region9: #{nl_subnet_forward.2} parent=0 // pred_fallthru
    _
  // Predicated region
  $region10: #{nl_subnet_forward.2} parent=0 // pred_check
    _
  $region11: #{nl_subnet_forward.2} parent=0 // pred_check_branch
    %20 = sbr.rel (0) target = $region13
  $region12: #{nl_subnet_forward.2} parent=0 // pred_region
    _
  $region13: #{nl_subnet_forward.2} parent=0 // pred_fallthru
    _
  // Predicated region
  $region14: #{nl_subnet_forward.2} parent=0 // pred_check
    _
  $region15: #{nl_subnet_forward.2} parent=0 // pred_check_branch
    %22 = sbr.rel (0) target = $region17
  $region16: #{nl_subnet_forward.2} parent=0 // pred_region
    _
  $region17: #{nl_subnet_forward.2} parent=0 // pred_fallthru
    _
  // Predicated region
  $region18: #{nl_subnet_forward.2} parent=0 // pred_check
    _
  $region19: #{nl_subnet_forward.2} parent=0 // pred_check_branch
    %24 = sbr.rel (0) target = $region21
  $region20: #{nl_subnet_forward.2} parent=0 // pred_region
    _
  $region21: #{nl_subnet_forward.2} parent=0 // pred_fallthru
    _
  // Predicated region
  $region22: #{nl_subnet_forward.2} parent=0 // pred_check
    _
  $region23: #{nl_subnet_forward.2} parent=0 // pred_check_branch
    %26 = sbr.rel (0) target = $region25
  $region24: #{nl_subnet_forward.2} parent=0 // pred_region
    _
  $region25: #{nl_subnet_forward.2} parent=0 // pred_fallthru
    _
  %v27 = vld [vmem:[%s1] sm:$0xff]
  %v28 = vld [vmem:[%s1 + $0x8] sm:$0xff]
  %v29 = vld [vmem:[%s1 + $0x10] sm:$0xff]
  %v30 = vld [vmem:[%s1 + $0x18] sm:$0xff]
  %v31 = vld [vmem:[%s2] sm:$0xff]
  %v32 = vld [vmem:[%s2 + $0x8] sm:$0xff]
  %v33 = vld [vmem:[%s2 + $0x10] sm:$0xff]
  %v34 = vld [vmem:[%s2 + $0x18] sm:$0xff]
  %v35 = vld [vmem:[%s3] sm:$0xff]
  %v36 = vld [vmem:[%s3 + $0x8] sm:$0xff]
  %v37 = vld [vmem:[%s3 + $0x10] sm:$0xff]
  %v38 = vld [vmem:[%s3 + $0x18] sm:$0xff]
  %v39 = vld [vmem:[%s4] sm:$0xff]
  %v40 = vld [vmem:[%s4 + $0x8] sm:$0xff]
  %v41 = vld [vmem:[%s4 + $0x10] sm:$0xff]
  %v42 = vld [vmem:[%s4 + $0x18] sm:$0xff]
  %v43 = vld [vmem:[%s4 + $0x20] sm:$0xff]
  %v44 = vld [vmem:[%s4 + $0x28] sm:$0xff]
  %v45 = vld [vmem:[%s5] sm:$0xff]
  %v46 = vld [vmem:[%s5 + $0x8] sm:$0xff]
  %v47 = vld [vmem:[%s5 + $0x10] sm:$0xff]
  %v48 = vld [vmem:[%s5 + $0x18] sm:$0xff]
  %v49 = vld [vmem:[%s5 + $0x20] sm:$0xff]
  %v50 = vld [vmem:[%s5 + $0x28] sm:$0xff]
  %v51 = vld [vmem:[%s0] sm:$0xff]
  %v52 = vld [vmem:[%s0 + $0x8] sm:$0xff]
  %v53 = vld [vmem:[%s0 + $0x10] sm:$0xff]
  %v54 = vld [vmem:[%s0 + $0x18] sm:$0xff]
  %v55 = vld [vmem:[%s0 + $0x20] sm:$0xff]
  %v56 = vld [vmem:[%s0 + $0x28] sm:$0xff]
  %v57 = vld [vmem:[%s0 + $0x30] sm:$0xff]
  %v58 = vld [vmem:[%s0 + $0x38] sm:$0xff]
  %v59 = vld [vmem:[%s0 + $0x40] sm:$0xff]
  %v60 = vld [vmem:[%s0 + $0x48] sm:$0xff]
  %v61 = vld [vmem:[%s0 + $0x50] sm:$0xff]
  %v62 = vld [vmem:[%s0 + $0x58] sm:$0xff]
  %v63 = vld [vmem:[%s0 + $0x60] sm:$0xff]
  %v64 = vld [vmem:[%s0 + $0x68] sm:$0xff]
  %v65 = vld [vmem:[%s0 + $0x70] sm:$0xff]
  %v66 = vld [vmem:[%s0 + $0x78] sm:$0xff]
  %vm67 = vcmask 523264
  %v69 = vsel %vm67, %v27, 0
  %v72 = vsel %vm67, %v28, 0
  %v75 = vsel %vm67, %v29, 0
  %v78 = vsel %vm67, %v30, 0
  %80 = vmatprep.subr.mxu0 %v52
  %81 = vmatpush1.msra.mxu0 %v51
  %82 = vmatprep.subr.mxu0 %v54
  %83 = vmatpush1.msra.mxu0 %v53
  %84 = vmatprep.subr.mxu0 %v56
  %85 = vmatpush1.msra.mxu0 %v55
  %86 = vmatprep.subr.mxu0 %v58
  %87 = vmatpush1.msra.mxu0 %v57
  %88 = vmatprep.subr.mxu0 %v60
  %89 = vmatpush1.msra.mxu0 %v59
  %90 = vmatprep.subr.mxu0 %v62
  %91 = vmatpush1.msra.mxu0 %v61
  %92 = vmatprep.subr.mxu0 %v64
  %93 = vmatpush1.msra.mxu0 %v63
  %94 = vmatprep.subr.mxu0 %v66
  %95 = vmatpush1.msra.mxu0 %v65
  %96 = vmatprep.subr.mxu0 0.0
  %97 = vmatpush1.msra.mxu0 0.0
  %98 = vmatprep.subr.mxu0 0.0
  %99 = vmatpush1.msra.mxu0 0.0
  %100 = vmatprep.subr.mxu0 0.0
  %101 = vmatpush1.msra.mxu0 0.0
  %102 = vmatprep.subr.mxu0 0.0
  %103 = vmatpush1.msra.mxu0 0.0
  %104 = vmatprep.subr.mxu0 0.0
  %105 = vmatpush1.msra.mxu0 0.0
  %106 = vmatprep.subr.mxu0 0.0
  %107 = vmatpush1.msra.mxu0 0.0
  %108 = vmatprep.subr.mxu0 0.0
  %109 = vmatpush1.msra.mxu0 0.0
  %110 = vmatprep.subr.mxu0 0.0
  %111 = vmatpush1.msra.mxu0 0.0
  %112 = vmatprep.subr.mxu0 0.0
  %113 = vmatpush1.msra.mxu0 0.0
  %114 = vmatprep.subr.mxu0 0.0
  %115 = vmatpush1.msra.mxu0 0.0
  %116 = vmatprep.subr.mxu0 0.0
  %117 = vmatpush1.msra.mxu0 0.0
  %118 = vmatprep.subr.mxu0 0.0
  %119 = vmatpush1.msra.mxu0 0.0
  %120 = vmatprep.subr.mxu0 0.0
  %121 = vmatpush1.msra.mxu0 0.0
  %122 = vmatprep.subr.mxu0 0.0
  %123 = vmatpush1.msra.mxu0 0.0
  %124 = vmatprep.subr.mxu0 0.0
  %125 = vmatpush1.msra.mxu0 0.0
  %126 = vmatprep.subr.mxu0 0.0
  %127 = vmatpush1.msra.mxu0 0.0
  %128 = vmatprep.subr.mxu0 0.0
  %129 = vmatpush1.msra.mxu0 0.0
  %130 = vmatprep.subr.mxu0 0.0
  %131 = vmatpush1.msra.mxu0 0.0
  %132 = vmatprep.subr.mxu0 0.0
  %133 = vmatpush1.msra.mxu0 0.0
  %134 = vmatprep.subr.mxu0 0.0
  %135 = vmatpush1.msra.mxu0 0.0
  %136 = vmatprep.subr.mxu0 0.0
  %137 = vmatpush1.msra.mxu0 0.0
  %138 = vmatprep.subr.mxu0 0.0
  %139 = vmatpush1.msra.mxu0 0.0
  %140 = vmatprep.subr.mxu0 0.0
  %141 = vmatpush1.msra.mxu0 0.0
  %142 = vmatprep.subr.mxu0 0.0
  %143 = vmatpush1.msra.mxu0 0.0
  %144 = vmatprep.mubr.f32.mxu0 0.0
  %145 = vmatmul.mubr.f32.gmra.mrb[0].mxu0 %v69
  %v146 = vpop.f32.mrb[0].mxu0
  %v147 = vadd.f32 0.0, %v146
  %v148 = vpop.f32.mrb[0].mxu0
  %v149 = vadd.f32 0.0, %v148
  %150 = vmatprep.mubr.f32.mxu0 0.0
  %151 = vmatmul.mubr.f32.gmra.mrb[0].mxu0 %v72
  %v152 = vpop.f32.mrb[0].mxu0
  %v153 = vadd.f32 0.0, %v152
  %v154 = vpop.f32.mrb[0].mxu0
  %v155 = vadd.f32 0.0, %v154
  %156 = vmatprep.mubr.f32.mxu0 0.0
  %157 = vmatmul.mubr.f32.gmra.mrb[0].mxu0 %v75
  %v158 = vpop.f32.mrb[0].mxu0
  %v159 = vadd.f32 0.0, %v158
  %v160 = vpop.f32.mrb[0].mxu0
  %v161 = vadd.f32 0.0, %v160
  %162 = vmatprep.mubr.f32.mxu0 0.0
  %163 = vmatmul.mubr.f32.gmra.mrb[0].mxu0 %v78
  %v164 = vpop.f32.mrb[0].mxu0
  %v165 = vadd.f32 0.0, %v164
  %v166 = vpop.f32.mrb[0].mxu0
  %v167 = vadd.f32 0.0, %v166
  %168 = vdwg.mxu0
  %170 = vset.pattern.permute.xlu0 0
  %171 = vperm.xlu0 %170, %v31
  %v172 = vpop.permute.xlu0 %171
  %175 = vset.pattern.permute.xlu0 0
  %176 = vperm.xlu0 %175, %v32
  %v177 = vpop.permute.xlu0 %176
  %180 = vset.pattern.permute.xlu0 0
  %181 = vperm.xlu0 %180, %v33
  %v182 = vpop.permute.xlu0 %181
  %185 = vset.pattern.permute.xlu0 0
  %186 = vperm.xlu0 %185, %v34
  %v187 = vpop.permute.xlu0 %186
  %v189 = vmul.f32 %v147, %v172
  %v190 = vmul.f32 %v149, %v172
  %v191 = vmul.f32 %v153, %v177
  %v192 = vmul.f32 %v155, %v177
  %v193 = vmul.f32 %v159, %v182
  %v194 = vmul.f32 %v161, %v182
  %v195 = vmul.f32 %v165, %v187
  %v196 = vmul.f32 %v167, %v187
  %198 = vset.pattern.permute.xlu0 0
  %199 = vperm.xlu0 %198, %v35
  %v200 = vpop.permute.xlu0 %199
  %203 = vset.pattern.permute.xlu0 0
  %204 = vperm.xlu0 %203, %v36
  %v205 = vpop.permute.xlu0 %204
  %208 = vset.pattern.permute.xlu0 0
  %209 = vperm.xlu0 %208, %v37
  %v210 = vpop.permute.xlu0 %209
  %213 = vset.pattern.permute.xlu0 0
  %214 = vperm.xlu0 %213, %v38
  %v215 = vpop.permute.xlu0 %214
  %v217 = vadd.f32 %v189, %v200
  %v218 = vadd.f32 %v190, %v200
  %v219 = vadd.f32 %v191, %v205
  %v220 = vadd.f32 %v192, %v205
  %v221 = vadd.f32 %v193, %v210
  %v222 = vadd.f32 %v194, %v210
  %v223 = vadd.f32 %v195, %v215
  %v224 = vadd.f32 %v196, %v215
  %v225 = vmax.f32 %v217, 0.0
  %v226 = vmax.f32 %v218, 0.0
  %v227 = vmax.f32 %v219, 0.0
  %v228 = vmax.f32 %v220, 0.0
  %v229 = vmax.f32 %v221, 0.0
  %v230 = vmax.f32 %v222, 0.0
  %v231 = vmax.f32 %v223, 0.0
  %v232 = vmax.f32 %v224, 0.0
  %233 = vst [vmem:[%s6] sm:$0xff] %v225
  %234 = vst [vmem:[%s6 + $0x8] sm:$0xff] %v226
  %235 = vst [vmem:[%s6 + $0x10] sm:$0xff] %v227
  %236 = vst [vmem:[%s6 + $0x18] sm:$0xff] %v228
  %237 = vst [vmem:[%s6 + $0x20] sm:$0xff] %v229
  %238 = vst [vmem:[%s6 + $0x28] sm:$0xff] %v230
  %239 = vst [vmem:[%s6 + $0x30] sm:$0xff] %v231
  %240 = vst [vmem:[%s6 + $0x38] sm:$0xff] %v232
  %242 = vset.pattern.permute.xlu0 0
  %243 = vperm.xlu0 %242, %v45
  %v244 = vpop.permute.xlu0 %243
  %247 = vset.pattern.permute.xlu0 0
  %248 = vperm.xlu0 %247, %v46
  %v249 = vpop.permute.xlu0 %248
  %252 = vset.pattern.permute.xlu0 0
  %253 = vperm.xlu0 %252, %v47
  %v254 = vpop.permute.xlu0 %253
  %257 = vset.pattern.permute.xlu0 0
  %258 = vperm.xlu0 %257, %v48
  %v259 = vpop.permute.xlu0 %258
  %262 = vset.pattern.permute.xlu0 0
  %263 = vperm.xlu0 %262, %v49
  %v264 = vpop.permute.xlu0 %263
  %267 = vset.pattern.permute.xlu0 0
  %268 = vperm.xlu0 %267, %v50
  %v269 = vpop.permute.xlu0 %268
  %vm271 = vcmask 261120
  %v273 = vsel %vm271, %v39, 0
  %v276 = vsel %vm271, %v40, 0
  %v279 = vsel %vm271, %v41, 0
  %v282 = vsel %vm271, %v42, 0
  %v285 = vsel %vm271, %v43, 0
  %v288 = vsel %vm271, %v44, 0
  %290 = vmatprep.subr.mxu0 %v226
  %291 = vmatpush1.msra.mxu0 %v225
  %292 = vmatprep.subr.mxu0 %v228
  %293 = vmatpush1.msra.mxu0 %v227
  %294 = vmatprep.subr.mxu0 %v230
  %295 = vmatpush1.msra.mxu0 %v229
  %296 = vmatprep.subr.mxu0 %v232
  %297 = vmatpush1.msra.mxu0 %v231
  %298 = vmatprep.subr.mxu0 0.0
  %299 = vmatpush1.msra.mxu0 0.0
  %300 = vmatprep.subr.mxu0 0.0
  %301 = vmatpush1.msra.mxu0 0.0
  %302 = vmatprep.subr.mxu0 0.0
  %303 = vmatpush1.msra.mxu0 0.0
  %304 = vmatprep.subr.mxu0 0.0
  %305 = vmatpush1.msra.mxu0 0.0
  %306 = vmatprep.subr.mxu0 0.0
  %307 = vmatpush1.msra.mxu0 0.0
  %308 = vmatprep.subr.mxu0 0.0
  %309 = vmatpush1.msra.mxu0 0.0
  %310 = vmatprep.subr.mxu0 0.0
  %311 = vmatpush1.msra.mxu0 0.0
  %312 = vmatprep.subr.mxu0 0.0
  %313 = vmatpush1.msra.mxu0 0.0
  %314 = vmatprep.subr.mxu0 0.0
  %315 = vmatpush1.msra.mxu0 0.0
  %316 = vmatprep.subr.mxu0 0.0
  %317 = vmatpush1.msra.mxu0 0.0
  %318 = vmatprep.subr.mxu0 0.0
  %319 = vmatpush1.msra.mxu0 0.0
  %320 = vmatprep.subr.mxu0 0.0
  %321 = vmatpush1.msra.mxu0 0.0
  %322 = vmatprep.subr.mxu0 0.0
  %323 = vmatpush1.msra.mxu0 0.0
  %324 = vmatprep.subr.mxu0 0.0
  %325 = vmatpush1.msra.mxu0 0.0
  %326 = vmatprep.subr.mxu0 0.0
  %327 = vmatpush1.msra.mxu0 0.0
  %328 = vmatprep.subr.mxu0 0.0
  %329 = vmatpush1.msra.mxu0 0.0
  %330 = vmatprep.subr.mxu0 0.0
  %331 = vmatpush1.msra.mxu0 0.0
  %332 = vmatprep.subr.mxu0 0.0
  %333 = vmatpush1.msra.mxu0 0.0
  %334 = vmatprep.subr.mxu0 0.0
  %335 = vmatpush1.msra.mxu0 0.0
  %336 = vmatprep.subr.mxu0 0.0
  %337 = vmatpush1.msra.mxu0 0.0
  %338 = vmatprep.subr.mxu0 0.0
  %339 = vmatpush1.msra.mxu0 0.0
  %340 = vmatprep.subr.mxu0 0.0
  %341 = vmatpush1.msra.mxu0 0.0
  %342 = vmatprep.subr.mxu0 0.0
  %343 = vmatpush1.msra.mxu0 0.0
  %344 = vmatprep.subr.mxu0 0.0
  %345 = vmatpush1.msra.mxu0 0.0
  %346 = vmatprep.subr.mxu0 0.0
  %347 = vmatpush1.msra.mxu0 0.0
  %348 = vmatprep.subr.mxu0 0.0
  %349 = vmatpush1.msra.mxu0 0.0
  %350 = vmatprep.subr.mxu0 0.0
  %351 = vmatpush1.msra.mxu0 0.0
  %352 = vmatprep.subr.mxu0 0.0
  %353 = vmatpush1.msra.mxu0 0.0
  %354 = vmatprep.mubr.f32.mxu0 0.0
  %355 = vmatmul.mubr.f32.gmra.mrb[0].mxu0 %v273
  %v356 = vpop.f32.mrb[0].mxu0
  %v357 = vadd.f32 %v244, %v356
  %v358 = vpop.f32.mrb[0].mxu0
  %v359 = vadd.f32 %v244, %v358
  %360 = vmatprep.mubr.f32.mxu0 0.0
  %361 = vmatmul.mubr.f32.gmra.mrb[0].mxu0 %v276
  %v362 = vpop.f32.mrb[0].mxu0
  %v363 = vadd.f32 %v249, %v362
  %v364 = vpop.f32.mrb[0].mxu0
  %v365 = vadd.f32 %v249, %v364
  %366 = vmatprep.mubr.f32.mxu0 0.0
  %367 = vmatmul.mubr.f32.gmra.mrb[0].mxu0 %v279
  %v368 = vpop.f32.mrb[0].mxu0
  %v369 = vadd.f32 %v254, %v368
  %v370 = vpop.f32.mrb[0].mxu0
  %v371 = vadd.f32 %v254, %v370
  %372 = vmatprep.mubr.f32.mxu0 0.0
  %373 = vmatmul.mubr.f32.gmra.mrb[0].mxu0 %v282
  %v374 = vpop.f32.mrb[0].mxu0
  %v375 = vadd.f32 %v259, %v374
  %v376 = vpop.f32.mrb[0].mxu0
  %v377 = vadd.f32 %v259, %v376
  %378 = vmatprep.mubr.f32.mxu0 0.0
  %379 = vmatmul.mubr.f32.gmra.mrb[0].mxu0 %v285
  %v380 = vpop.f32.mrb[0].mxu0
  %v381 = vadd.f32 %v264, %v380
  %v382 = vpop.f32.mrb[0].mxu0
  %v383 = vadd.f32 %v264, %v382
  %384 = vmatprep.mubr.f32.mxu0 0.0
  %385 = vmatmul.mubr.f32.gmra.mrb[0].mxu0 %v288
  %v386 = vpop.f32.mrb[0].mxu0
  %v387 = vadd.f32 %v269, %v386
  %v388 = vpop.f32.mrb[0].mxu0
  %v389 = vadd.f32 %v269, %v388
  %390 = vdwg.mxu0
  %v391 = vpack.c.bf16 %v363, %v357
  %v392 = vpack.c.bf16 %v365, %v359
  %v393 = vpack.c.bf16 %v375, %v369
  %v394 = vpack.c.bf16 %v377, %v371
  %v395 = vpack.c.bf16 %v387, %v381
  %v396 = vpack.c.bf16 %v389, %v383
  %v399 = vunpack.c.l.b16 %v391
  %v400 = vunpack.c.l.b16 %v392
  %v401 = vunpack.c.h.b16 %v391
  %v402 = vunpack.c.h.b16 %v392
  %v403 = vpack.c.b16 %v400, %v399
  %v404 = vpack.c.b16 %v402, %v401
  %407 = vst [vmem:[%s7] sm:$0xff] %v403
  %408 = vst [vmem:[%s7 + $0x8] sm:$0xff] %v404
  %v411 = vunpack.c.l.b16 %v393
  %v412 = vunpack.c.l.b16 %v394
  %v413 = vunpack.c.h.b16 %v393
  %v414 = vunpack.c.h.b16 %v394
  %v415 = vpack.c.b16 %v412, %v411
  %v416 = vpack.c.b16 %v414, %v413
  %419 = vst [vmem:[%s8] sm:$0xff] %v415
  %420 = vst [vmem:[%s8 + $0x8] sm:$0xff] %v416
  %v423 = vunpack.c.l.b16 %v395
  %v424 = vunpack.c.l.b16 %v396
  %v425 = vunpack.c.h.b16 %v395
  %v426 = vunpack.c.h.b16 %v396
  %v427 = vpack.c.b16 %v424, %v423
  %v428 = vpack.c.b16 %v426, %v425
  %431 = vst [vmem:[%s9] sm:$0xff] %v427
  %432 = vst [vmem:[%s9 + $0x8] sm:$0xff] %v428
  %s433 = scalar_lea.vmem %s0, 128
  %v434 = vld [vmem:[%s433] sm:$0xff]
  %v435 = vld [vmem:[%s433 + $0x8] sm:$0xff]
  %v436 = vld [vmem:[%s433 + $0x10] sm:$0xff]
  %v437 = vld [vmem:[%s433 + $0x18] sm:$0xff]
  %v438 = vld [vmem:[%s433 + $0x20] sm:$0xff]
  %v439 = vld [vmem:[%s433 + $0x28] sm:$0xff]
  %v440 = vld [vmem:[%s433 + $0x30] sm:$0xff]
  %v441 = vld [vmem:[%s433 + $0x38] sm:$0xff]
  %v442 = vld [vmem:[%s433 + $0x40] sm:$0xff]
  %v443 = vld [vmem:[%s433 + $0x48] sm:$0xff]
  %v444 = vld [vmem:[%s433 + $0x50] sm:$0xff]
  %v445 = vld [vmem:[%s433 + $0x58] sm:$0xff]
  %v446 = vld [vmem:[%s433 + $0x60] sm:$0xff]
  %v447 = vld [vmem:[%s433 + $0x68] sm:$0xff]
  %v448 = vld [vmem:[%s433 + $0x70] sm:$0xff]
  %v449 = vld [vmem:[%s433 + $0x78] sm:$0xff]
  %450 = vmatprep.subr.mxu0 %v435
  %451 = vmatpush1.msra.mxu0 %v434
  %452 = vmatprep.subr.mxu0 %v437
  %453 = vmatpush1.msra.mxu0 %v436
  %454 = vmatprep.subr.mxu0 %v439
  %455 = vmatpush1.msra.mxu0 %v438
  %456 = vmatprep.subr.mxu0 %v441
  %457 = vmatpush1.msra.mxu0 %v440
  %458 = vmatprep.subr.mxu0 %v443
  %459 = vmatpush1.msra.mxu0 %v442
  %460 = vmatprep.subr.mxu0 %v445
  %461 = vmatpush1.msra.mxu0 %v444
  %462 = vmatprep.subr.mxu0 %v447
  %463 = vmatpush1.msra.mxu0 %v446
  %464 = vmatprep.subr.mxu0 %v449
  %465 = vmatpush1.msra.mxu0 %v448
  %466 = vmatprep.subr.mxu0 0.0
  %467 = vmatpush1.msra.mxu0 0.0
  %468 = vmatprep.subr.mxu0 0.0
  %469 = vmatpush1.msra.mxu0 0.0
  %470 = vmatprep.subr.mxu0 0.0
  %471 = vmatpush1.msra.mxu0 0.0
  %472 = vmatprep.subr.mxu0 0.0
  %473 = vmatpush1.msra.mxu0 0.0
  %474 = vmatprep.subr.mxu0 0.0
  %475 = vmatpush1.msra.mxu0 0.0
  %476 = vmatprep.subr.mxu0 0.0
  %477 = vmatpush1.msra.mxu0 0.0
  %478 = vmatprep.subr.mxu0 0.0
  %479 = vmatpush1.msra.mxu0 0.0
  %480 = vmatprep.subr.mxu0 0.0
  %481 = vmatpush1.msra.mxu0 0.0
  %482 = vmatprep.subr.mxu0 0.0
  %483 = vmatpush1.msra.mxu0 0.0
  %484 = vmatprep.subr.mxu0 0.0
  %485 = vmatpush1.msra.mxu0 0.0
  %486 = vmatprep.subr.mxu0 0.0
  %487 = vmatpush1.msra.mxu0 0.0
  %488 = vmatprep.subr.mxu0 0.0
  %489 = vmatpush1.msra.mxu0 0.0
  %490 = vmatprep.subr.mxu0 0.0
  %491 = vmatpush1.msra.mxu0 0.0
  %492 = vmatprep.subr.mxu0 0.0
  %493 = vmatpush1.msra.mxu0 0.0
  %494 = vmatprep.subr.mxu0 0.0
  %495 = vmatpush1.msra.mxu0 0.0
  %496 = vmatprep.subr.mxu0 0.0
  %497 = vmatpush1.msra.mxu0 0.0
  %498 = vmatprep.subr.mxu0 0.0
  %499 = vmatpush1.msra.mxu0 0.0
  %500 = vmatprep.subr.mxu0 0.0
  %501 = vmatpush1.msra.mxu0 0.0
  %502 = vmatprep.subr.mxu0 0.0
  %503 = vmatpush1.msra.mxu0 0.0
  %504 = vmatprep.subr.mxu0 0.0
  %505 = vmatpush1.msra.mxu0 0.0
  %506 = vmatprep.subr.mxu0 0.0
  %507 = vmatpush1.msra.mxu0 0.0
  %508 = vmatprep.subr.mxu0 0.0
  %509 = vmatpush1.msra.mxu0 0.0
  %510 = vmatprep.subr.mxu0 0.0
  %511 = vmatpush1.msra.mxu0 0.0
  %512 = vmatprep.subr.mxu0 0.0
  %513 = vmatpush1.msra.mxu0 0.0
  %514 = vmatprep.mubr.f32.mxu0 0.0
  %515 = vmatmul.mubr.f32.gmra.mrb[0].mxu0 %v69
  %v516 = vpop.f32.mrb[0].mxu0
  %v517 = vadd.f32 0.0, %v516
  %v518 = vpop.f32.mrb[0].mxu0
  %v519 = vadd.f32 0.0, %v518
  %520 = vmatprep.mubr.f32.mxu0 0.0
  %521 = vmatmul.mubr.f32.gmra.mrb[0].mxu0 %v72
  %v522 = vpop.f32.mrb[0].mxu0
  %v523 = vadd.f32 0.0, %v522
  %v524 = vpop.f32.mrb[0].mxu0
  %v525 = vadd.f32 0.0, %v524
  %526 = vmatprep.mubr.f32.mxu0 0.0
  %527 = vmatmul.mubr.f32.gmra.mrb[0].mxu0 %v75
  %v528 = vpop.f32.mrb[0].mxu0
  %v529 = vadd.f32 0.0, %v528
  %v530 = vpop.f32.mrb[0].mxu0
  %v531 = vadd.f32 0.0, %v530
  %532 = vmatprep.mubr.f32.mxu0 0.0
  %533 = vmatmul.mubr.f32.gmra.mrb[0].mxu0 %v78
  %v534 = vpop.f32.mrb[0].mxu0
  %v535 = vadd.f32 0.0, %v534
  %v536 = vpop.f32.mrb[0].mxu0
  %v537 = vadd.f32 0.0, %v536
  %538 = vdwg.mxu0
  %v539 = vmul.f32 %v517, %v172
  %v540 = vmul.f32 %v519, %v172
  %v541 = vmul.f32 %v523, %v177
  %v542 = vmul.f32 %v525, %v177
  %v543 = vmul.f32 %v529, %v182
  %v544 = vmul.f32 %v531, %v182
  %v545 = vmul.f32 %v535, %v187
  %v546 = vmul.f32 %v537, %v187
  %v547 = vadd.f32 %v539, %v200
  %v548 = vadd.f32 %v540, %v200
  %v549 = vadd.f32 %v541, %v205
  %v550 = vadd.f32 %v542, %v205
  %v551 = vadd.f32 %v543, %v210
  %v552 = vadd.f32 %v544, %v210
  %v553 = vadd.f32 %v545, %v215
  %v554 = vadd.f32 %v546, %v215
  %v555 = vmax.f32 %v547, 0.0
  %v556 = vmax.f32 %v548, 0.0
  %v557 = vmax.f32 %v549, 0.0
  %v558 = vmax.f32 %v550, 0.0
  %v559 = vmax.f32 %v551, 0.0
  %v560 = vmax.f32 %v552, 0.0
  %v561 = vmax.f32 %v553, 0.0
  %v562 = vmax.f32 %v554, 0.0
  %s563 = scalar_lea.vmem %s6, 64
  %564 = vst [vmem:[%s563] sm:$0xff] %v555
  %565 = vst [vmem:[%s563 + $0x8] sm:$0xff] %v556
  %566 = vst [vmem:[%s563 + $0x10] sm:$0xff] %v557
  %567 = vst [vmem:[%s563 + $0x18] sm:$0xff] %v558
  %568 = vst [vmem:[%s563 + $0x20] sm:$0xff] %v559
  %569 = vst [vmem:[%s563 + $0x28] sm:$0xff] %v560
  %570 = vst [vmem:[%s563 + $0x30] sm:$0xff] %v561
  %571 = vst [vmem:[%s563 + $0x38] sm:$0xff] %v562
  %572 = vmatprep.subr.mxu0 %v556
  %573 = vmatpush1.msra.mxu0 %v555
  %574 = vmatprep.subr.mxu0 %v558
  %575 = vmatpush1.msra.mxu0 %v557
  %576 = vmatprep.subr.mxu0 %v560
  %577 = vmatpush1.msra.mxu0 %v559
  %578 = vmatprep.subr.mxu0 %v562
  %579 = vmatpush1.msra.mxu0 %v561
  %580 = vmatprep.subr.mxu0 0.0
  %581 = vmatpush1.msra.mxu0 0.0
  %582 = vmatprep.subr.mxu0 0.0
  %583 = vmatpush1.msra.mxu0 0.0
  %584 = vmatprep.subr.mxu0 0.0
  %585 = vmatpush1.msra.mxu0 0.0
  %586 = vmatprep.subr.mxu0 0.0
  %587 = vmatpush1.msra.mxu0 0.0
  %588 = vmatprep.subr.mxu0 0.0
  %589 = vmatpush1.msra.mxu0 0.0
  %590 = vmatprep.subr.mxu0 0.0
  %591 = vmatpush1.msra.mxu0 0.0
  %592 = vmatprep.subr.mxu0 0.0
  %593 = vmatpush1.msra.mxu0 0.0
  %594 = vmatprep.subr.mxu0 0.0
  %595 = vmatpush1.msra.mxu0 0.0
  %596 = vmatprep.subr.mxu0 0.0
  %597 = vmatpush1.msra.mxu0 0.0
  %598 = vmatprep.subr.mxu0 0.0
  %599 = vmatpush1.msra.mxu0 0.0
  %600 = vmatprep.subr.mxu0 0.0
  %601 = vmatpush1.msra.mxu0 0.0
  %602 = vmatprep.subr.mxu0 0.0
  %603 = vmatpush1.msra.mxu0 0.0
  %604 = vmatprep.subr.mxu0 0.0
  %605 = vmatpush1.msra.mxu0 0.0
  %606 = vmatprep.subr.mxu0 0.0
  %607 = vmatpush1.msra.mxu0 0.0
  %608 = vmatprep.subr.mxu0 0.0
  %609 = vmatpush1.msra.mxu0 0.0
  %610 = vmatprep.subr.mxu0 0.0
  %611 = vmatpush1.msra.mxu0 0.0
  %612 = vmatprep.subr.mxu0 0.0
  %613 = vmatpush1.msra.mxu0 0.0
  %614 = vmatprep.subr.mxu0 0.0
  %615 = vmatpush1.msra.mxu0 0.0
  %616 = vmatprep.subr.mxu0 0.0
  %617 = vmatpush1.msra.mxu0 0.0
  %618 = vmatprep.subr.mxu0 0.0
  %619 = vmatpush1.msra.mxu0 0.0
  %620 = vmatprep.subr.mxu0 0.0
  %621 = vmatpush1.msra.mxu0 0.0
  %622 = vmatprep.subr.mxu0 0.0
  %623 = vmatpush1.msra.mxu0 0.0
  %624 = vmatprep.subr.mxu0 0.0
  %625 = vmatpush1.msra.mxu0 0.0
  %626 = vmatprep.subr.mxu0 0.0
  %627 = vmatpush1.msra.mxu0 0.0
  %628 = vmatprep.subr.mxu0 0.0
  %629 = vmatpush1.msra.mxu0 0.0
  %630 = vmatprep.subr.mxu0 0.0
  %631 = vmatpush1.msra.mxu0 0.0
  %632 = vmatprep.subr.mxu0 0.0
  %633 = vmatpush1.msra.mxu0 0.0
  %634 = vmatprep.subr.mxu0 0.0
  %635 = vmatpush1.msra.mxu0 0.0
  %636 = vmatprep.mubr.f32.mxu0 0.0
  %637 = vmatmul.mubr.f32.gmra.mrb[0].mxu0 %v273
  %v638 = vpop.f32.mrb[0].mxu0
  %v639 = vadd.f32 %v244, %v638
  %v640 = vpop.f32.mrb[0].mxu0
  %v641 = vadd.f32 %v244, %v640
  %642 = vmatprep.mubr.f32.mxu0 0.0
  %643 = vmatmul.mubr.f32.gmra.mrb[0].mxu0 %v276
  %v644 = vpop.f32.mrb[0].mxu0
  %v645 = vadd.f32 %v249, %v644
  %v646 = vpop.f32.mrb[0].mxu0
  %v647 = vadd.f32 %v249, %v646
  %648 = vmatprep.mubr.f32.mxu0 0.0
  %649 = vmatmul.mubr.f32.gmra.mrb[0].mxu0 %v279
  %v650 = vpop.f32.mrb[0].mxu0
  %v651 = vadd.f32 %v254, %v650
  %v652 = vpop.f32.mrb[0].mxu0
  %v653 = vadd.f32 %v254, %v652
  %654 = vmatprep.mubr.f32.mxu0 0.0
  %655 = vmatmul.mubr.f32.gmra.mrb[0].mxu0 %v282
  %v656 = vpop.f32.mrb[0].mxu0
  %v657 = vadd.f32 %v259, %v656
  %v658 = vpop.f32.mrb[0].mxu0
  %v659 = vadd.f32 %v259, %v658
  %660 = vmatprep.mubr.f32.mxu0 0.0
  %661 = vmatmul.mubr.f32.gmra.mrb[0].mxu0 %v285
  %v662 = vpop.f32.mrb[0].mxu0
  %v663 = vadd.f32 %v264, %v662
  %v664 = vpop.f32.mrb[0].mxu0
  %v665 = vadd.f32 %v264, %v664
  %666 = vmatprep.mubr.f32.mxu0 0.0
  %667 = vmatmul.mubr.f32.gmra.mrb[0].mxu0 %v288
  %v668 = vpop.f32.mrb[0].mxu0
  %v669 = vadd.f32 %v269, %v668
  %v670 = vpop.f32.mrb[0].mxu0
  %v671 = vadd.f32 %v269, %v670
  %672 = vdwg.mxu0
  %v673 = vpack.c.bf16 %v645, %v639
  %v674 = vpack.c.bf16 %v647, %v641
  %v675 = vpack.c.bf16 %v657, %v651
  %v676 = vpack.c.bf16 %v659, %v653
  %v677 = vpack.c.bf16 %v669, %v663
  %v678 = vpack.c.bf16 %v671, %v665
  %v681 = vunpack.c.l.b16 %v673
  %v682 = vunpack.c.l.b16 %v674
  %v683 = vunpack.c.h.b16 %v673
  %v684 = vunpack.c.h.b16 %v674
  %v685 = vpack.c.b16 %v682, %v681
  %v686 = vpack.c.b16 %v684, %v683
  %s689 = scalar_lea.vmem %s7, 16
  %690 = vst [vmem:[%s689] sm:$0xff] %v685
  %691 = vst [vmem:[%s689 + $0x8] sm:$0xff] %v686
  %v694 = vunpack.c.l.b16 %v675
  %v695 = vunpack.c.l.b16 %v676
  %v696 = vunpack.c.h.b16 %v675
  %v697 = vunpack.c.h.b16 %v676
  %v698 = vpack.c.b16 %v695, %v694
  %v699 = vpack.c.b16 %v697, %v696
  %s702 = scalar_lea.vmem %s8, 16
  %703 = vst [vmem:[%s702] sm:$0xff] %v698
  %704 = vst [vmem:[%s702 + $0x8] sm:$0xff] %v699
  %v707 = vunpack.c.l.b16 %v677
  %v708 = vunpack.c.l.b16 %v678
  %v709 = vunpack.c.h.b16 %v677
  %v710 = vunpack.c.h.b16 %v678
  %v711 = vpack.c.b16 %v708, %v707
  %v712 = vpack.c.b16 %v710, %v709
  %s715 = scalar_lea.vmem %s9, 16
  %716 = vst [vmem:[%s715] sm:$0xff] %v711
  %717 = vst [vmem:[%s715 + $0x8] sm:$0xff] %v712
  // Predicated region
  $region26: #{nl_subnet_forward.2} parent=0 // pred_check
    _
  $region27: #{nl_subnet_forward.2} parent=0 // pred_check_branch
    %719 = sbr.rel (0) target = $region29
  $region28: #{nl_subnet_forward.2} parent=0 // pred_region
    _
  $region29: #{nl_subnet_forward.2} parent=0 // pred_fallthru
    _
  // Predicated region
  $region30: #{nl_subnet_forward.2} parent=0 // pred_check
    _
  $region31: #{nl_subnet_forward.2} parent=0 // pred_check_branch
    %721 = sbr.rel (0) target = $region33
  $region32: #{nl_subnet_forward.2} parent=0 // pred_region
    _
  $region33: #{nl_subnet_forward.2} parent=0 // pred_fallthru
    _
  // Predicated region
  $region34: #{nl_subnet_forward.2} parent=0 // pred_check
    _
  $region35: #{nl_subnet_forward.2} parent=0 // pred_check_branch
    %723 = sbr.rel (0) target = $region37
  $region36: #{nl_subnet_forward.2} parent=0 // pred_region
    _
  $region37: #{nl_subnet_forward.2} parent=0 // pred_fallthru
    _
  // Predicated region
  $region38: #{nl_subnet_forward.2} parent=0 // pred_check
    _
  $region39: #{nl_subnet_forward.2} parent=0 // pred_check_branch
    %725 = sbr.rel (0) target = $region41
  $region40: #{nl_subnet_forward.2} parent=0 // pred_region
    _
  $region41: #{nl_subnet_forward.2} parent=0 // pred_fallthru
    _
  // Predicated region
  $region42: #{nl_subnet_forward.2} parent=0 // pred_check
    _
  $region43: #{nl_subnet_forward.2} parent=0 // pred_check_branch
    %727 = sbr.rel (0) target = $region45
  $region44: #{nl_subnet_forward.2} parent=0 // pred_region
    _
  $region45: #{nl_subnet_forward.2} parent=0 // pred_fallthru
    _
  // Predicated region
  $region46: #{nl_subnet_forward.2} parent=0 // pred_check
    _
  $region47: #{nl_subnet_forward.2} parent=0 // pred_check_branch
    %729 = sbr.rel (0) target = $region49
  $region48: #{nl_subnet_forward.2} parent=0 // pred_region
    _
  $region49: #{nl_subnet_forward.2} parent=0 // pred_fallthru
    _
  // Predicated region
  $region50: #{nl_subnet_forward.2} parent=0 // pred_check
    _
  $region51: #{nl_subnet_forward.2} parent=0 // pred_check_branch
    %731 = sbr.rel (0) target = $region53
  $region52: #{nl_subnet_forward.2} parent=0 // pred_region
    _
  $region53: #{nl_subnet_forward.2} parent=0 // pred_fallthru
    _
  // Predicated region
  $region54: #{nl_subnet_forward.2} parent=0 // pred_check
    _
  $region55: #{nl_subnet_forward.2} parent=0 // pred_check_branch
    %733 = sbr.rel (0) target = $region57
  $region56: #{nl_subnet_forward.2} parent=0 // pred_region
    _
  $region57: #{nl_subnet_forward.2} parent=0 // pred_fallthru
    _

// kernel: nl_subnet_forward.3
$region0: #{nl_subnet_forward.3}
  #allocation0 [shape = 'u32[]', space=smem, size = 0x4, offset = 0x4, fixed_abs, tag = 'smem constant byte address 0x4 - core index']
  #allocation1 [shape = 'u32[144,128]{1,0:T(1,128)}', space=vmem, size = 0x12000, scoped, tag = 'internal scratch']
  %s0 = inlined_call_operand.vmem [shape: bf16[2,16,256], index: 0, kind: input, shape index: {}]
  %s1 = inlined_call_operand.vmem [shape: bf16[2,16,256], index: 1, kind: input, shape index: {}]
  %s2 = inlined_call_operand.vmem [shape: bf16[2,16,256], index: 2, kind: input, shape index: {}]
  %s3 = inlined_call_operand.vmem [shape: f32[2,32,256], index: 3, kind: input, shape index: {}]
  %s4 = inlined_call_operand.vmem [shape: f32[32,16], index: 4, kind: input, shape index: {}]
  %s5 = inlined_call_operand.vmem [shape: f32[32,1], index: 5, kind: input, shape index: {}]
  %s6 = inlined_call_operand.vmem [shape: f32[32,1], index: 6, kind: input, shape index: {}]
  %s7 = inlined_call_operand.vmem [shape: f32[1,32], index: 7, kind: input, shape index: {}]
  %s8 = inlined_call_operand.vmem [shape: f32[2,1,256], index: 8, kind: output, shape index: {}]
  %s9 = sld [smem:[#allocation0]]
  $region65: #{nl_subnet_forward.3} parent=0
    _
  %s11 = ssub.s32 1, %s9
  %s12 = scalar_select 0, %s11, %s9
  loop: start=0, step=1, limit=4
  $region2: #{nl_subnet_forward.3} parent=0 // loop_pre_header
    _
  $region3: #{nl_subnet_forward.3} parent=0 // loop_header
    %s14 = sphi 0, %s18
    %p15 = scmp.ge.s32.totalorder %s14, 4
    %s21 = sphi 0, %s33
    %s22 = sphi 0, %s29
    %s23 = sphi 0, %s21
    %s24 = sphi 0, %s22
    %s25 = sphi 0, %s23
    %s26 = sphi 0, %s24
    %s38 = sphi 0, %s40
    %s41 = sphi 0, %s38
    %s42 = sphi 0, %s41
    %s58 = sphi 0, %s42
    %s64 = sphi 0, %s66
    %s67 = sphi 0, %s64
    %s68 = sphi 0, %s67
    %s84 = sphi 0, %s68
    %s90 = sphi 0, %s92
    %s93 = sphi 0, %s90
    %s94 = sphi 0, %s93
    %s110 = sphi 0, %s94
    %s118 = sphi 0, %s120
    %s121 = sphi 0, %s118
    %s122 = sphi 0, %s121
    %s138 = sphi 0, %s122
    %s142 = sphi 0, %s142
    %s144 = sphi 0, %s142
    %s145 = sphi 0, %s144
    %s159 = sphi 0, %s145
    %s163 = sphi 0, %s163
    %s165 = sphi 0, %s163
    %s166 = sphi 0, %s165
    %s180 = sphi 0, %s166
    %s184 = sphi 0, %s184
    %s186 = sphi 0, %s184
    %s187 = sphi 0, %s186
    %s201 = sphi 0, %s187
    %s205 = sphi 0, %s205
    %s207 = sphi 0, %s205
    %s208 = sphi 0, %s207
    %s222 = sphi 0, %s208
    %s230 = sphi 0, %s232
    %s233 = sphi 0, %s230
    %s234 = sphi 0, %s233
    %s250 = sphi 0, %s234
  $region4: #{nl_subnet_forward.3} parent=0 // loop_header_branch
    %17 = sbr.rel (%p15) target = $region8
  $region5: #{nl_subnet_forward.3} parent=0 // loop_body
    %s19 = ssub.s32 %s14, 1
    %s20 = ssub.s32 %s14, 2
    %s27 = sadd.s32 1, %s22
    %p28 = scmp.ge.s32.totalorder %s27, 1
    %s29 = scalar_select %p28, 0, %s27
    %s30 = sadd.s32 1, %s21
    %s31 = scalar_select %p28, %s30, %s21
    %p32 = scmp.ge.s32.totalorder %s31, 2
    %s33 = scalar_select %p32, 0, %s31
    %s34 = ssub.s32 %s21, %s33
    %s35 = ssub.s32 %s22, %s29
    %s36 = sor.u32 %s34, %s35
    %p37 = scmp.eq.s32.totalorder %s36, 0
    %s39 = sadd.s32 %s38, 1
    %s40 = scalar_select %p37, %s38, %s39
    %p43 = pneg %p37
    %p44 = scmp.eq.s32.totalorder %s14, 1
    %p45 = por %p43, %p44
    %p46 = scmp.ne.s32.totalorder %s38, %s41
    %p47 = scmp.eq.s32.totalorder %s14, 0
    %p48 = por %p46, %p47
    %p49 = scmp.ne.s32.totalorder %s38, %s41
    %p50 = scmp.eq.s32.totalorder %s19, 1
    %p51 = por %p49, %p50
    %p52 = scmp.ne.s32.totalorder %s41, %s42
    %p53 = scmp.eq.s32.totalorder %s19, 0
    %p54 = por %p52, %p53
    %p55 = scmp.ne.s32.totalorder %s41, %s42
    %p56 = scmp.eq.s32.totalorder %s20, 1
    %p57 = por %p55, %p56
    %p59 = scmp.ne.s32.totalorder %s42, %s58
    %p60 = scmp.eq.s32.totalorder %s20, 0
    %p61 = por %p59, %p60
    %s62 = ssub.s32 %s21, %s33
    %p63 = scmp.eq.s32.totalorder %s62, 0
    %s65 = sadd.s32 %s64, 1
    %s66 = scalar_select %p63, %s64, %s65
    %p69 = pneg %p63
    %p70 = scmp.eq.s32.totalorder %s14, 1
    %p71 = por %p69, %p70
    %p72 = scmp.ne.s32.totalorder %s64, %s67
    %p73 = scmp.eq.s32.totalorder %s14, 0
    %p74 = por %p72, %p73
    %p75 = scmp.ne.s32.totalorder %s64, %s67
    %p76 = scmp.eq.s32.totalorder %s19, 1
    %p77 = por %p75, %p76
    %p78 = scmp.ne.s32.totalorder %s67, %s68
    %p79 = scmp.eq.s32.totalorder %s19, 0
    %p80 = por %p78, %p79
    %p81 = scmp.ne.s32.totalorder %s67, %s68
    %p82 = scmp.eq.s32.totalorder %s20, 1
    %p83 = por %p81, %p82
    %p85 = scmp.ne.s32.totalorder %s68, %s84
    %p86 = scmp.eq.s32.totalorder %s20, 0
    %p87 = por %p85, %p86
    %s88 = ssub.s32 %s21, %s33
    %p89 = scmp.eq.s32.totalorder %s88, 0
    %s91 = sadd.s32 %s90, 1
    %s92 = scalar_select %p89, %s90, %s91
    %p95 = pneg %p89
    %p96 = scmp.eq.s32.totalorder %s14, 1
    %p97 = por %p95, %p96
    %p98 = scmp.ne.s32.totalorder %s90, %s93
    %p99 = scmp.eq.s32.totalorder %s14, 0
    %p100 = por %p98, %p99
    %p101 = scmp.ne.s32.totalorder %s90, %s93
    %p102 = scmp.eq.s32.totalorder %s19, 1
    %p103 = por %p101, %p102
    %p104 = scmp.ne.s32.totalorder %s93, %s94
    %p105 = scmp.eq.s32.totalorder %s19, 0
    %p106 = por %p104, %p105
    %p107 = scmp.ne.s32.totalorder %s93, %s94
    %p108 = scmp.eq.s32.totalorder %s20, 1
    %p109 = por %p107, %p108
    %p111 = scmp.ne.s32.totalorder %s94, %s110
    %p112 = scmp.eq.s32.totalorder %s20, 0
    %p113 = por %p111, %p112
    %s114 = ssub.s32 %s21, %s33
    %s115 = ssub.s32 %s22, %s29
    %s116 = sor.u32 %s114, %s115
    %p117 = scmp.eq.s32.totalorder %s116, 0
    %s119 = sadd.s32 %s118, 1
    %s120 = scalar_select %p117, %s118, %s119
    %p123 = pneg %p117
    %p124 = scmp.eq.s32.totalorder %s14, 1
    %p125 = por %p123, %p124
    %p126 = scmp.ne.s32.totalorder %s118, %s121
    %p127 = scmp.eq.s32.totalorder %s14, 0
    %p128 = por %p126, %p127
    %p129 = scmp.ne.s32.totalorder %s118, %s121
    %p130 = scmp.eq.s32.totalorder %s19, 1
    %p131 = por %p129, %p130
    %p132 = scmp.ne.s32.totalorder %s121, %s122
    %p133 = scmp.eq.s32.totalorder %s19, 0
    %p134 = por %p132, %p133
    %p135 = scmp.ne.s32.totalorder %s121, %s122
    %p136 = scmp.eq.s32.totalorder %s20, 1
    %p137 = por %p135, %p136
    %p139 = scmp.ne.s32.totalorder %s122, %s138
    %p140 = scmp.eq.s32.totalorder %s20, 0
    %p141 = por %p139, %p140
    %s143 = sadd.s32 %s142, 1
    %p146 = scmp.eq.s32.totalorder %s14, 1
    %p147 = scmp.ne.s32.totalorder %s142, %s144
    %p148 = scmp.eq.s32.totalorder %s14, 0
    %p149 = por %p147, %p148
    %p150 = scmp.ne.s32.totalorder %s142, %s144
    %p151 = scmp.eq.s32.totalorder %s19, 1
    %p152 = por %p150, %p151
    %p153 = scmp.ne.s32.totalorder %s144, %s145
    %p154 = scmp.eq.s32.totalorder %s19, 0
    %p155 = por %p153, %p154
    %p156 = scmp.ne.s32.totalorder %s144, %s145
    %p157 = scmp.eq.s32.totalorder %s20, 1
    %p158 = por %p156, %p157
    %p160 = scmp.ne.s32.totalorder %s145, %s159
    %p161 = scmp.eq.s32.totalorder %s20, 0
    %p162 = por %p160, %p161
    %s164 = sadd.s32 %s163, 1
    %p167 = scmp.eq.s32.totalorder %s14, 1
    %p168 = scmp.ne.s32.totalorder %s163, %s165
    %p169 = scmp.eq.s32.totalorder %s14, 0
    %p170 = por %p168, %p169
    %p171 = scmp.ne.s32.totalorder %s163, %s165
    %p172 = scmp.eq.s32.totalorder %s19, 1
    %p173 = por %p171, %p172
    %p174 = scmp.ne.s32.totalorder %s165, %s166
    %p175 = scmp.eq.s32.totalorder %s19, 0
    %p176 = por %p174, %p175
    %p177 = scmp.ne.s32.totalorder %s165, %s166
    %p178 = scmp.eq.s32.totalorder %s20, 1
    %p179 = por %p177, %p178
    %p181 = scmp.ne.s32.totalorder %s166, %s180
    %p182 = scmp.eq.s32.totalorder %s20, 0
    %p183 = por %p181, %p182
    %s185 = sadd.s32 %s184, 1
    %p188 = scmp.eq.s32.totalorder %s14, 1
    %p189 = scmp.ne.s32.totalorder %s184, %s186
    %p190 = scmp.eq.s32.totalorder %s14, 0
    %p191 = por %p189, %p190
    %p192 = scmp.ne.s32.totalorder %s184, %s186
    %p193 = scmp.eq.s32.totalorder %s19, 1
    %p194 = por %p192, %p193
    %p195 = scmp.ne.s32.totalorder %s186, %s187
    %p196 = scmp.eq.s32.totalorder %s19, 0
    %p197 = por %p195, %p196
    %p198 = scmp.ne.s32.totalorder %s186, %s187
    %p199 = scmp.eq.s32.totalorder %s20, 1
    %p200 = por %p198, %p199
    %p202 = scmp.ne.s32.totalorder %s187, %s201
    %p203 = scmp.eq.s32.totalorder %s20, 0
    %p204 = por %p202, %p203
    %s206 = sadd.s32 %s205, 1
    %p209 = scmp.eq.s32.totalorder %s14, 1
    %p210 = scmp.ne.s32.totalorder %s205, %s207
    %p211 = scmp.eq.s32.totalorder %s14, 0
    %p212 = por %p210, %p211
    %p213 = scmp.ne.s32.totalorder %s205, %s207
    %p214 = scmp.eq.s32.totalorder %s19, 1
    %p215 = por %p213, %p214
    %p216 = scmp.ne.s32.totalorder %s207, %s208
    %p217 = scmp.eq.s32.totalorder %s19, 0
    %p218 = por %p216, %p217
    %p219 = scmp.ne.s32.totalorder %s207, %s208
    %p220 = scmp.eq.s32.totalorder %s20, 1
    %p221 = por %p219, %p220
    %p223 = scmp.ne.s32.totalorder %s208, %s222
    %p224 = scmp.eq.s32.totalorder %s20, 0
    %p225 = por %p223, %p224
    %s226 = ssub.s32 %s21, %s33
    %s227 = ssub.s32 %s22, %s29
    %s228 = sor.u32 %s226, %s227
    %p229 = scmp.eq.s32.totalorder %s228, 0
    %s231 = sadd.s32 %s230, 1
    %s232 = scalar_select %p229, %s230, %s231
    %p235 = pneg %p229
    %p236 = scmp.eq.s32.totalorder %s14, 1
    %p237 = por %p235, %p236
    %p238 = scmp.ne.s32.totalorder %s230, %s233
    %p239 = scmp.eq.s32.totalorder %s14, 0
    %p240 = por %p238, %p239
    %p241 = scmp.ne.s32.totalorder %s230, %s233
    %p242 = scmp.eq.s32.totalorder %s19, 1
    %p243 = por %p241, %p242
    %p244 = scmp.ne.s32.totalorder %s233, %s234
    %p245 = scmp.eq.s32.totalorder %s19, 0
    %p246 = por %p244, %p245
    %p247 = scmp.ne.s32.totalorder %s233, %s234
    %p248 = scmp.eq.s32.totalorder %s20, 1
    %p249 = por %p247, %p248
    %p251 = scmp.ne.s32.totalorder %s234, %s250
    %p252 = scmp.eq.s32.totalorder %s20, 0
    %p253 = por %p251, %p252
    %p254 = scmp.le.s32.totalorder 1, %s14
    %p255 = scmp.lt.s32.totalorder %s14, 3
    %p256 = pnand %p254, %p255
    %p257 = pneg %p256
    // Predicated region
    $region9: #{nl_subnet_forward.3} parent=5 // pred_check
      _
    $region10: #{nl_subnet_forward.3} parent=5 // pred_check_branch
      %259 = sbr.rel (%p256) target = $region12
    $region11: #{nl_subnet_forward.3} parent=5 // pred_region
      %s260 = ssub.s32 %s14, 1
      // Predicated region
      $region13: #{nl_subnet_forward.3} parent=11 // pred_check
        %p261 = pneg %p155
      $region14: #{nl_subnet_forward.3} parent=11 // pred_check_branch
        %263 = sbr.rel (%p261) target = $region16
      $region15: #{nl_subnet_forward.3} parent=11 // pred_region
        _
      $region16: #{nl_subnet_forward.3} parent=11 // pred_fallthru
        _
      // Predicated region
      $region17: #{nl_subnet_forward.3} parent=11 // pred_check
        %p264 = pneg %p176
      $region18: #{nl_subnet_forward.3} parent=11 // pred_check_branch
        %266 = sbr.rel (%p264) target = $region20
      $region19: #{nl_subnet_forward.3} parent=11 // pred_region
        _
      $region20: #{nl_subnet_forward.3} parent=11 // pred_fallthru
        _
      // Predicated region
      $region21: #{nl_subnet_forward.3} parent=11 // pred_check
        %p267 = pneg %p197
      $region22: #{nl_subnet_forward.3} parent=11 // pred_check_branch
        %269 = sbr.rel (%p267) target = $region24
      $region23: #{nl_subnet_forward.3} parent=11 // pred_region
        _
      $region24: #{nl_subnet_forward.3} parent=11 // pred_fallthru
        _
      // Predicated region
      $region25: #{nl_subnet_forward.3} parent=11 // pred_check
        %p270 = pneg %p218
      $region26: #{nl_subnet_forward.3} parent=11 // pred_check_branch
        %272 = sbr.rel (%p270) target = $region28
      $region27: #{nl_subnet_forward.3} parent=11 // pred_region
        _
      $region28: #{nl_subnet_forward.3} parent=11 // pred_fallthru
        _
    $region12: #{nl_subnet_forward.3} parent=5 // pred_fallthru
      _
    %p273 = scmp.lt.s32.totalorder %s14, 2
    // Predicated region
    $region29: #{nl_subnet_forward.3} parent=5 // pred_check
      %p274 = pneg %p273
    $region30: #{nl_subnet_forward.3} parent=5 // pred_check_branch
      %276 = sbr.rel (%p274) target = $region32
    $region31: #{nl_subnet_forward.3} parent=5 // pred_region
      // Predicated region
      $region33: #{nl_subnet_forward.3} parent=31 // pred_check
        %p277 = pneg %p48
      $region34: #{nl_subnet_forward.3} parent=31 // pred_check_branch
        %279 = sbr.rel (%p277) target = $region36
      $region35: #{nl_subnet_forward.3} parent=31 // pred_region
        %s280 = smul.u32 2, %s22
        %p281 = scmp.lt.s32.totalorder %s21, 1
        %s282 = scalar_select %p281, %s21, 1
        %p283 = scmp.lt.s32.totalorder %s280, 1
        %s284 = scalar_select %p283, %s280, 1
        %s285 = smul.addr %s282, 4
        %s286 = sadd.s32 %s284, %s285
        %s287 = smul.addr %s286, 4
        %s288 = scalar_lea.vmem %s0, %s287
        %s289 = smul.u32 2, %s22
      $region36: #{nl_subnet_forward.3} parent=31 // pred_fallthru
        _
      // Predicated region
      $region37: #{nl_subnet_forward.3} parent=31 // pred_check
        %p290 = pneg %p74
      $region38: #{nl_subnet_forward.3} parent=31 // pred_check_branch
        %292 = sbr.rel (%p290) target = $region40
      $region39: #{nl_subnet_forward.3} parent=31 // pred_region
        %p293 = scmp.lt.s32.totalorder %s21, 1
        %s294 = scalar_select %p293, %s21, 1
        %s295 = smul.addr %s294, 4
        %s296 = smul.addr %s295, 4
        %s297 = scalar_lea.vmem %s1, %s296
      $region40: #{nl_subnet_forward.3} parent=31 // pred_fallthru
        _
      // Predicated region
      $region41: #{nl_subnet_forward.3} parent=31 // pred_check
        %p298 = pneg %p100
      $region42: #{nl_subnet_forward.3} parent=31 // pred_check_branch
        %300 = sbr.rel (%p298) target = $region44
      $region43: #{nl_subnet_forward.3} parent=31 // pred_region
        %p301 = scmp.lt.s32.totalorder %s21, 1
        %s302 = scalar_select %p301, %s21, 1
        %s303 = smul.addr %s302, 4
        %s304 = smul.addr %s303, 4
        %s305 = scalar_lea.vmem %s2, %s304
      $region44: #{nl_subnet_forward.3} parent=31 // pred_fallthru
        _
      // Predicated region
      $region45: #{nl_subnet_forward.3} parent=31 // pred_check
        %p306 = pneg %p128
      $region46: #{nl_subnet_forward.3} parent=31 // pred_check_branch
        %308 = sbr.rel (%p306) target = $region48
      $region47: #{nl_subnet_forward.3} parent=31 // pred_region
        %s309 = smul.u32 2, %s22
        %p310 = scmp.lt.s32.totalorder %s21, 1
        %s311 = scalar_select %p310, %s21, 1
        %p312 = scmp.lt.s32.totalorder %s309, 1
        %s313 = scalar_select %p312, %s309, 1
        %s314 = smul.addr %s311, 8
        %s315 = sadd.s32 %s313, %s314
        %s316 = smul.addr %s315, 8
        %s317 = scalar_lea.vmem %s3, %s316
        %s318 = smul.u32 2, %s22
      $region48: #{nl_subnet_forward.3} parent=31 // pred_fallthru
        _
    $region32: #{nl_subnet_forward.3} parent=5 // pred_fallthru
      _
    %p319 = scmp.le.s32.totalorder 1, %s14
    %p320 = scmp.lt.s32.totalorder %s14, 3
    %p321 = pnand %p319, %p320
    %p322 = pneg %p321
    // Predicated region
    $region49: #{nl_subnet_forward.3} parent=5 // pred_check
      _
    $region50: #{nl_subnet_forward.3} parent=5 // pred_check_branch
      %324 = sbr.rel (%p321) target = $region52
    $region51: #{nl_subnet_forward.3} parent=5 // pred_region
      %s325 = ssub.s32 %s14, 1
      %s326 = smul.u32 2, %s24
      %p327 = scmp.lt.s32.totalorder %s23, 1
      %s328 = scalar_select %p327, %s23, 1
      %p329 = scmp.lt.s32.totalorder %s326, 1
      %s330 = scalar_select %p329, %s326, 1
      %s331 = smul.addr %s328, 4
      %s332 = sadd.s32 %s330, %s331
      %s333 = smul.addr %s332, 4
      %s334 = scalar_lea.vmem %s0, %s333
      %p335 = pneg %p54
      %p336 = pneg %p51
      %p337 = scmp.lt.s32.totalorder %s23, 1
      %s338 = scalar_select %p337, %s23, 1
      %s339 = smul.addr %s338, 4
      %s340 = smul.addr %s339, 4
      %s341 = scalar_lea.vmem %s1, %s340
      %p342 = pneg %p80
      %p343 = pneg %p77
      %p344 = scmp.lt.s32.totalorder %s23, 1
      %s345 = scalar_select %p344, %s23, 1
      %s346 = smul.addr %s345, 4
      %s347 = smul.addr %s346, 4
      %s348 = scalar_lea.vmem %s2, %s347
      %p349 = pneg %p106
      %p350 = pneg %p103
      %s351 = smul.u32 2, %s24
      %p352 = scmp.lt.s32.totalorder %s23, 1
      %s353 = scalar_select %p352, %s23, 1
      %p354 = scmp.lt.s32.totalorder %s351, 1
      %s355 = scalar_select %p354, %s351, 1
      %s356 = smul.addr %s353, 8
      %s357 = sadd.s32 %s355, %s356
      %s358 = smul.addr %s357, 8
      %s359 = scalar_lea.vmem %s3, %s358
      %p360 = pneg %p134
      %p361 = pneg %p131
      %p362 = pneg %p155
      %p363 = pneg %p152
      %p364 = pneg %p176
      %p365 = pneg %p173
      %p366 = pneg %p197
      %p367 = pneg %p194
      %p368 = pneg %p218
      %p369 = pneg %p215
      %p370 = pneg %p246
      %p371 = pneg %p243
      %s372 = smul.u32 2, %s24
      %p373 = scmp.lt.s32.totalorder %s23, 1
      %s374 = scalar_select %p373, %s23, 1
      %p375 = scmp.lt.s32.totalorder %s372, 1
      %s376 = scalar_select %p375, %s372, 1
      %s377 = smul.addr %s374, 2
      %s378 = sadd.s32 %s376, %s377
      %s379 = scalar_lea.vmem %s8, %s378
      %s380 = smul.u32 2, %s24
      %p381 = scmp.lt.s32.totalorder %s23, 1
      %s382 = scalar_select %p381, %s23, 1
      %p383 = scmp.lt.s32.totalorder %s380, 1
      %s384 = scalar_select %p383, %s380, 1
      %s385 = smul.addr %s382, 4
      %s386 = sadd.s32 %s384, %s385
      %s387 = smul.addr %s386, 4
      %s388 = scalar_lea.vmem %s0, %s387
      %s389 = smul.u32 2, %s24
      %p390 = scmp.lt.s32.totalorder %s23, 1
      %s391 = scalar_select %p390, %s23, 1
      %s392 = smul.addr %s391, 4
      %s393 = smul.addr %s392, 4
      %s394 = scalar_lea.vmem %s1, %s393
      %p395 = scmp.lt.s32.totalorder %s23, 1
      %s396 = scalar_select %p395, %s23, 1
      %s397 = smul.addr %s396, 4
      %s398 = smul.addr %s397, 4
      %s399 = scalar_lea.vmem %s2, %s398
      %s400 = smul.u32 2, %s24
      %p401 = scmp.lt.s32.totalorder %s23, 1
      %s402 = scalar_select %p401, %s23, 1
      %p403 = scmp.lt.s32.totalorder %s400, 1
      %s404 = scalar_select %p403, %s400, 1
      %s405 = smul.addr %s402, 8
      %s406 = sadd.s32 %s404, %s405
      %s407 = smul.addr %s406, 8
      %s408 = scalar_lea.vmem %s3, %s407
      %s409 = smul.u32 2, %s24
      %s410 = smul.u32 2, %s24
      %p411 = scmp.lt.s32.totalorder %s23, 1
      %s412 = scalar_select %p411, %s23, 1
      %p413 = scmp.lt.s32.totalorder %s410, 1
      %s414 = scalar_select %p413, %s410, 1
      %s415 = smul.addr %s412, 2
      %s416 = sadd.s32 %s414, %s415
      %s417 = scalar_lea.vmem %s8, %s416
      %s418 = smul.u32 2, %s24
      %v420 = vld [vmem:[%s388] sm:$0xff]
      %v421 = vld [vmem:[%s388 + $0x8] sm:$0xff]
      %v422 = vld [vmem:[%s394] sm:$0xff]
      %v423 = vld [vmem:[%s394 + $0x8] sm:$0xff]
      %v424 = vld [vmem:[%s399] sm:$0xff]
      %v425 = vld [vmem:[%s399 + $0x8] sm:$0xff]
      %v428 = vunpack.c.l.b16 %v420
      %v429 = vunpack.c.h.b16 %v420
      %v430 = vunpack.c.l.b16 %v421
      %v431 = vunpack.c.h.b16 %v421
      %v432 = vpack.c.b16 %v430, %v428
      %v433 = vpack.c.b16 %v431, %v429
      %436 = vxpose.xlu0.c.b16.start [1/8] %v432, 128
      %437 = vxpose.xlu0.c.b16.cont [2/8] 0, 128
      %438 = vxpose.xlu0.c.b16.cont [3/8] 0, 128
      %439 = vxpose.xlu0.c.b16.cont [4/8] 0, 128
      %440 = vxpose.xlu0.c.b16.cont [5/8] 0, 128
      %441 = vxpose.xlu0.c.b16.cont [6/8] 0, 128
      %442 = vxpose.xlu0.c.b16.cont [7/8] 0, 128
      %443 = vxpose.xlu0.c.b16.end [8/8] 0, 128
      %v444 = vpop.trf.xlu0
      %v445 = vpop.trf.xlu0
      %v446 = vpop.trf.xlu0
      %v447 = vpop.trf.xlu0
      %v448 = vpop.trf.xlu0
      %v449 = vpop.trf.xlu0
      %v450 = vpop.trf.xlu0
      %v451 = vpop.trf.xlu0
      %452 = vxpose.xlu0.c.b16.start [1/8] %v433, 128
      %453 = vxpose.xlu0.c.b16.cont [2/8] 0, 128
      %454 = vxpose.xlu0.c.b16.cont [3/8] 0, 128
      %455 = vxpose.xlu0.c.b16.cont [4/8] 0, 128
      %456 = vxpose.xlu0.c.b16.cont [5/8] 0, 128
      %457 = vxpose.xlu0.c.b16.cont [6/8] 0, 128
      %458 = vxpose.xlu0.c.b16.cont [7/8] 0, 128
      %459 = vxpose.xlu0.c.b16.end [8/8] 0, 128
      %v460 = vpop.trf.xlu0
      %v461 = vpop.trf.xlu0
      %v462 = vpop.trf.xlu0
      %v463 = vpop.trf.xlu0
      %v464 = vpop.trf.xlu0
      %v465 = vpop.trf.xlu0
      %v466 = vpop.trf.xlu0
      %v467 = vpop.trf.xlu0
      %v470 = vunpack.c.l.b16 %v422
      %v471 = vunpack.c.h.b16 %v422
      %v472 = vunpack.c.l.b16 %v423
      %v473 = vunpack.c.h.b16 %v423
      %v474 = vpack.c.b16 %v472, %v470
      %v475 = vpack.c.b16 %v473, %v471
      %vm478 = vcmask 130048
      %v480 = vsel %vm478, %v444, 0
      %v483 = vsel %vm478, %v445, 0
      %v486 = vsel %vm478, %v446, 0
      %v489 = vsel %vm478, %v447, 0
      %v492 = vsel %vm478, %v448, 0
      %v495 = vsel %vm478, %v449, 0
      %v498 = vsel %vm478, %v450, 0
      %v501 = vsel %vm478, %v451, 0
      %v504 = vsel %vm478, %v460, 0
      %v507 = vsel %vm478, %v461, 0
      %v510 = vsel %vm478, %v462, 0
      %v513 = vsel %vm478, %v463, 0
      %v516 = vsel %vm478, %v464, 0
      %v519 = vsel %vm478, %v465, 0
      %v522 = vsel %vm478, %v466, 0
      %v525 = vsel %vm478, %v467, 0
      %527 = vmatprep.subr.bf16.mxu0 %v475
      %528 = vmatpush1.bf16.msra.mxu0 %v474
      %529 = vmatprep.subr.bf16.mxu0 0
      %530 = vmatpush1.bf16.msra.mxu0 0
      %531 = vmatprep.subr.bf16.mxu0 0
      %532 = vmatpush1.bf16.msra.mxu0 0
      %533 = vmatprep.subr.bf16.mxu0 0
      %534 = vmatpush1.bf16.msra.mxu0 0
      %535 = vmatprep.subr.bf16.mxu0 0
      %536 = vmatpush1.bf16.msra.mxu0 0
      %537 = vmatprep.subr.bf16.mxu0 0
      %538 = vmatpush1.bf16.msra.mxu0 0
      %539 = vmatprep.subr.bf16.mxu0 0
      %540 = vmatpush1.bf16.msra.mxu0 0
      %541 = vmatprep.subr.bf16.mxu0 0
      %542 = vmatpush1.bf16.msra.mxu0 0
      %543 = vmatprep.subr.bf16.mxu0 0
      %544 = vmatpush1.bf16.msra.mxu0 0
      %545 = vmatprep.subr.bf16.mxu0 0
      %546 = vmatpush1.bf16.msra.mxu0 0
      %547 = vmatprep.subr.bf16.mxu0 0
      %548 = vmatpush1.bf16.msra.mxu0 0
      %549 = vmatprep.subr.bf16.mxu0 0
      %550 = vmatpush1.bf16.msra.mxu0 0
      %551 = vmatprep.subr.bf16.mxu0 0
      %552 = vmatpush1.bf16.msra.mxu0 0
      %553 = vmatprep.subr.bf16.mxu0 0
      %554 = vmatpush1.bf16.msra.mxu0 0
      %555 = vmatprep.subr.bf16.mxu0 0
      %556 = vmatpush1.bf16.msra.mxu0 0
      %557 = vmatprep.subr.bf16.mxu0 0
      %558 = vmatpush1.bf16.msra.mxu0 0
      %559 = vmatprep.mubr.bf16.mxu0 0
      %560 = vmatmul.mubr.bf16.gmra.mrb[0].mxu0 %v480
      %v561 = vpop.f32.mrb[0].mxu0
      %v562 = vadd.f32 0.0, %v561
      %v563 = vpop.f32.mrb[0].mxu0
      %v564 = vadd.f32 0.0, %v563
      %v565 = vpop.f32.mrb[0].mxu0
      %v566 = vadd.f32 0.0, %v565
      %v567 = vpop.f32.mrb[0].mxu0
      %v568 = vadd.f32 0.0, %v567
      %569 = vmatprep.mubr.bf16.mxu0 0
      %570 = vmatmul.mubr.bf16.gmra.mrb[0].mxu0 %v483
      %v571 = vpop.f32.mrb[0].mxu0
      %v572 = vadd.f32 0.0, %v571
      %v573 = vpop.f32.mrb[0].mxu0
      %v574 = vadd.f32 0.0, %v573
      %v575 = vpop.f32.mrb[0].mxu0
      %v576 = vadd.f32 0.0, %v575
      %v577 = vpop.f32.mrb[0].mxu0
      %v578 = vadd.f32 0.0, %v577
      %579 = vmatprep.mubr.bf16.mxu0 0
      %580 = vmatmul.mubr.bf16.gmra.mrb[0].mxu0 %v486
      %v581 = vpop.f32.mrb[0].mxu0
      %v582 = vadd.f32 0.0, %v581
      %v583 = vpop.f32.mrb[0].mxu0
      %v584 = vadd.f32 0.0, %v583
      %v585 = vpop.f32.mrb[0].mxu0
      %v586 = vadd.f32 0.0, %v585
      %v587 = vpop.f32.mrb[0].mxu0
      %v588 = vadd.f32 0.0, %v587
      %589 = vmatprep.mubr.bf16.mxu0 0
      %590 = vmatmul.mubr.bf16.gmra.mrb[0].mxu0 %v489
      %v591 = vpop.f32.mrb[0].mxu0
      %v592 = vadd.f32 0.0, %v591
      %v593 = vpop.f32.mrb[0].mxu0
      %v594 = vadd.f32 0.0, %v593
      %v595 = vpop.f32.mrb[0].mxu0
      %v596 = vadd.f32 0.0, %v595
      %v597 = vpop.f32.mrb[0].mxu0
      %v598 = vadd.f32 0.0, %v597
      %599 = vmatprep.mubr.bf16.mxu0 0
      %600 = vmatmul.mubr.bf16.gmra.mrb[0].mxu0 %v492
      %v601 = vpop.f32.mrb[0].mxu0
      %v602 = vadd.f32 0.0, %v601
      %v603 = vpop.f32.mrb[0].mxu0
      %v604 = vadd.f32 0.0, %v603
      %v605 = vpop.f32.mrb[0].mxu0
      %v606 = vadd.f32 0.0, %v605
      %v607 = vpop.f32.mrb[0].mxu0
      %v608 = vadd.f32 0.0, %v607
      %609 = vmatprep.mubr.bf16.mxu0 0
      %610 = vmatmul.mubr.bf16.gmra.mrb[0].mxu0 %v495
      %v611 = vpop.f32.mrb[0].mxu0
      %v612 = vadd.f32 0.0, %v611
      %v613 = vpop.f32.mrb[0].mxu0
      %v614 = vadd.f32 0.0, %v613
      %v615 = vpop.f32.mrb[0].mxu0
      %v616 = vadd.f32 0.0, %v615
      %v617 = vpop.f32.mrb[0].mxu0
      %v618 = vadd.f32 0.0, %v617
      %619 = vmatprep.mubr.bf16.mxu0 0
      %620 = vmatmul.mubr.bf16.gmra.mrb[0].mxu0 %v498
      %v621 = vpop.f32.mrb[0].mxu0
      %v622 = vadd.f32 0.0, %v621
      %v623 = vpop.f32.mrb[0].mxu0
      %v624 = vadd.f32 0.0, %v623
      %v625 = vpop.f32.mrb[0].mxu0
      %v626 = vadd.f32 0.0, %v625
      %v627 = vpop.f32.mrb[0].mxu0
      %v628 = vadd.f32 0.0, %v627
      %629 = vmatprep.mubr.bf16.mxu0 0
      %630 = vmatmul.mubr.bf16.gmra.mrb[0].mxu0 %v501
      %v631 = vpop.f32.mrb[0].mxu0
      %v632 = vadd.f32 0.0, %v631
      %v633 = vpop.f32.mrb[0].mxu0
      %v634 = vadd.f32 0.0, %v633
      %v635 = vpop.f32.mrb[0].mxu0
      %v636 = vadd.f32 0.0, %v635
      %v637 = vpop.f32.mrb[0].mxu0
      %v638 = vadd.f32 0.0, %v637
      %639 = vmatprep.mubr.bf16.mxu0 0
      %640 = vmatmul.mubr.bf16.gmra.mrb[0].mxu0 %v504
      %v641 = vpop.f32.mrb[0].mxu0
      %v642 = vadd.f32 0.0, %v641
      %v643 = vpop.f32.mrb[0].mxu0
      %v644 = vadd.f32 0.0, %v643
      %v645 = vpop.f32.mrb[0].mxu0
      %v646 = vadd.f32 0.0, %v645
      %v647 = vpop.f32.mrb[0].mxu0
      %v648 = vadd.f32 0.0, %v647
      %649 = vmatprep.mubr.bf16.mxu0 0
      %650 = vmatmul.mubr.bf16.gmra.mrb[0].mxu0 %v507
      %v651 = vpop.f32.mrb[0].mxu0
      %v652 = vadd.f32 0.0, %v651
      %v653 = vpop.f32.mrb[0].mxu0
      %v654 = vadd.f32 0.0, %v653
      %v655 = vpop.f32.mrb[0].mxu0
      %v656 = vadd.f32 0.0, %v655
      %v657 = vpop.f32.mrb[0].mxu0
      %v658 = vadd.f32 0.0, %v657
      %659 = vmatprep.mubr.bf16.mxu0 0
      %660 = vmatmul.mubr.bf16.gmra.mrb[0].mxu0 %v510
      %v661 = vpop.f32.mrb[0].mxu0
      %v662 = vadd.f32 0.0, %v661
      %v663 = vpop.f32.mrb[0].mxu0
      %v664 = vadd.f32 0.0, %v663
      %v665 = vpop.f32.mrb[0].mxu0
      %v666 = vadd.f32 0.0, %v665
      %v667 = vpop.f32.mrb[0].mxu0
      %v668 = vadd.f32 0.0, %v667
      %669 = vmatprep.mubr.bf16.mxu0 0
      %670 = vmatmul.mubr.bf16.gmra.mrb[0].mxu0 %v513
      %v671 = vpop.f32.mrb[0].mxu0
      %v672 = vadd.f32 0.0, %v671
      %v673 = vpop.f32.mrb[0].mxu0
      %v674 = vadd.f32 0.0, %v673
      %v675 = vpop.f32.mrb[0].mxu0
      %v676 = vadd.f32 0.0, %v675
      %v677 = vpop.f32.mrb[0].mxu0
      %v678 = vadd.f32 0.0, %v677
      %679 = vmatprep.mubr.bf16.mxu0 0
      %680 = vmatmul.mubr.bf16.gmra.mrb[0].mxu0 %v516
      %v681 = vpop.f32.mrb[0].mxu0
      %v682 = vadd.f32 0.0, %v681
      %v683 = vpop.f32.mrb[0].mxu0
      %v684 = vadd.f32 0.0, %v683
      %v685 = vpop.f32.mrb[0].mxu0
      %v686 = vadd.f32 0.0, %v685
      %v687 = vpop.f32.mrb[0].mxu0
      %v688 = vadd.f32 0.0, %v687
      %689 = vmatprep.mubr.bf16.mxu0 0
      %690 = vmatmul.mubr.bf16.gmra.mrb[0].mxu0 %v519
      %v691 = vpop.f32.mrb[0].mxu0
      %v692 = vadd.f32 0.0, %v691
      %v693 = vpop.f32.mrb[0].mxu0
      %v694 = vadd.f32 0.0, %v693
      %v695 = vpop.f32.mrb[0].mxu0
      %v696 = vadd.f32 0.0, %v695
      %v697 = vpop.f32.mrb[0].mxu0
      %v698 = vadd.f32 0.0, %v697
      %699 = vmatprep.mubr.bf16.mxu0 0
      %700 = vmatmul.mubr.bf16.gmra.mrb[0].mxu0 %v522
      %v701 = vpop.f32.mrb[0].mxu0
      %v702 = vadd.f32 0.0, %v701
      %v703 = vpop.f32.mrb[0].mxu0
      %v704 = vadd.f32 0.0, %v703
      %v705 = vpop.f32.mrb[0].mxu0
      %v706 = vadd.f32 0.0, %v705
      %v707 = vpop.f32.mrb[0].mxu0
      %v708 = vadd.f32 0.0, %v707
      %709 = vmatprep.mubr.bf16.mxu0 0
      %710 = vmatmul.mubr.bf16.gmra.mrb[0].mxu0 %v525
      %v711 = vpop.f32.mrb[0].mxu0
      %v712 = vadd.f32 0.0, %v711
      %v713 = vpop.f32.mrb[0].mxu0
      %v714 = vadd.f32 0.0, %v713
      %v715 = vpop.f32.mrb[0].mxu0
      %v716 = vadd.f32 0.0, %v715
      %v717 = vpop.f32.mrb[0].mxu0
      %v718 = vadd.f32 0.0, %v717
      %719 = vdwg.mxu0
      %v720 = vmax.f32 %v562, %v564
      %721 = vmax.xlane.f32.xlu0 %v720
      %v722 = vpop.xlane.xlu0 %721
      %v723 = vmax.f32 %v566, %v568
      %724 = vmax.xlane.f32.xlu0 %v723
      %v725 = vpop.xlane.xlu0 %724
      %v726 = vmax.f32 %v572, %v574
      %727 = vmax.xlane.f32.xlu0 %v726
      %v728 = vpop.xlane.xlu0 %727
      %v729 = vmax.f32 %v576, %v578
      %730 = vmax.xlane.f32.xlu0 %v729
      %v731 = vpop.xlane.xlu0 %730
      %v732 = vmax.f32 %v582, %v584
      %733 = vmax.xlane.f32.xlu0 %v732
      %v734 = vpop.xlane.xlu0 %733
      %v735 = vmax.f32 %v586, %v588
      %736 = vmax.xlane.f32.xlu0 %v735
      %v737 = vpop.xlane.xlu0 %736
      %v738 = vmax.f32 %v592, %v594
      %739 = vmax.xlane.f32.xlu0 %v738
      %v740 = vpop.xlane.xlu0 %739
      %v741 = vmax.f32 %v596, %v598
      %742 = vmax.xlane.f32.xlu0 %v741
      %v743 = vpop.xlane.xlu0 %742
      %v744 = vmax.f32 %v602, %v604
      %745 = vmax.xlane.f32.xlu0 %v744
      %v746 = vpop.xlane.xlu0 %745
      %v747 = vmax.f32 %v606, %v608
      %748 = vmax.xlane.f32.xlu0 %v747
      %v749 = vpop.xlane.xlu0 %748
      %v750 = vmax.f32 %v612, %v614
      %751 = vmax.xlane.f32.xlu0 %v750
      %v752 = vpop.xlane.xlu0 %751
      %v753 = vmax.f32 %v616, %v618
      %754 = vmax.xlane.f32.xlu0 %v753
      %v755 = vpop.xlane.xlu0 %754
      %v756 = vmax.f32 %v622, %v624
      %757 = vmax.xlane.f32.xlu0 %v756
      %v758 = vpop.xlane.xlu0 %757
      %v759 = vmax.f32 %v626, %v628
      %760 = vmax.xlane.f32.xlu0 %v759
      %v761 = vpop.xlane.xlu0 %760
      %v762 = vmax.f32 %v632, %v634
      %763 = vmax.xlane.f32.xlu0 %v762
      %v764 = vpop.xlane.xlu0 %763
      %v765 = vmax.f32 %v636, %v638
      %766 = vmax.xlane.f32.xlu0 %v765
      %v767 = vpop.xlane.xlu0 %766
      %v768 = vmax.f32 %v642, %v644
      %769 = vmax.xlane.f32.xlu0 %v768
      %v770 = vpop.xlane.xlu0 %769
      %v771 = vmax.f32 %v646, %v648
      %772 = vmax.xlane.f32.xlu0 %v771
      %v773 = vpop.xlane.xlu0 %772
      %v774 = vmax.f32 %v652, %v654
      %775 = vmax.xlane.f32.xlu0 %v774
      %v776 = vpop.xlane.xlu0 %775
      %v777 = vmax.f32 %v656, %v658
      %778 = vmax.xlane.f32.xlu0 %v777
      %v779 = vpop.xlane.xlu0 %778
      %v780 = vmax.f32 %v662, %v664
      %781 = vmax.xlane.f32.xlu0 %v780
      %v782 = vpop.xlane.xlu0 %781
      %v783 = vmax.f32 %v666, %v668
      %784 = vmax.xlane.f32.xlu0 %v783
      %v785 = vpop.xlane.xlu0 %784
      %v786 = vmax.f32 %v672, %v674
      %787 = vmax.xlane.f32.xlu0 %v786
      %v788 = vpop.xlane.xlu0 %787
      %v789 = vmax.f32 %v676, %v678
      %790 = vmax.xlane.f32.xlu0 %v789
      %v791 = vpop.xlane.xlu0 %790
      %v792 = vmax.f32 %v682, %v684
      %793 = vmax.xlane.f32.xlu0 %v792
      %v794 = vpop.xlane.xlu0 %793
      %v795 = vmax.f32 %v686, %v688
      %796 = vmax.xlane.f32.xlu0 %v795
      %v797 = vpop.xlane.xlu0 %796
      %v798 = vmax.f32 %v692, %v694
      %799 = vmax.xlane.f32.xlu0 %v798
      %v800 = vpop.xlane.xlu0 %799
      %v801 = vmax.f32 %v696, %v698
      %802 = vmax.xlane.f32.xlu0 %v801
      %v803 = vpop.xlane.xlu0 %802
      %v804 = vmax.f32 %v702, %v704
      %805 = vmax.xlane.f32.xlu0 %v804
      %v806 = vpop.xlane.xlu0 %805
      %v807 = vmax.f32 %v706, %v708
      %808 = vmax.xlane.f32.xlu0 %v807
      %v809 = vpop.xlane.xlu0 %808
      %v810 = vmax.f32 %v712, %v714
      %811 = vmax.xlane.f32.xlu0 %v810
      %v812 = vpop.xlane.xlu0 %811
      %v813 = vmax.f32 %v716, %v718
      %814 = vmax.xlane.f32.xlu0 %v813
      %v815 = vpop.xlane.xlu0 %814
      %v816 = vsub.f32 %v562, %v722
      %v817 = vsub.f32 %v564, %v722
      %v818 = vsub.f32 %v566, %v725
      %v819 = vsub.f32 %v568, %v725
      %v820 = vsub.f32 %v572, %v728
      %v821 = vsub.f32 %v574, %v728
      %v822 = vsub.f32 %v576, %v731
      %v823 = vsub.f32 %v578, %v731
      %v824 = vsub.f32 %v582, %v734
      %v825 = vsub.f32 %v584, %v734
      %v826 = vsub.f32 %v586, %v737
      %v827 = vsub.f32 %v588, %v737
      %v828 = vsub.f32 %v592, %v740
      %v829 = vsub.f32 %v594, %v740
      %v830 = vsub.f32 %v596, %v743
      %v831 = vsub.f32 %v598, %v743
      %v832 = vsub.f32 %v602, %v746
      %v833 = vsub.f32 %v604, %v746
      %v834 = vsub.f32 %v606, %v749
      %v835 = vsub.f32 %v608, %v749
      %v836 = vsub.f32 %v612, %v752
      %v837 = vsub.f32 %v614, %v752
      %v838 = vsub.f32 %v616, %v755
      %v839 = vsub.f32 %v618, %v755
      %v840 = vsub.f32 %v622, %v758
      %v841 = vsub.f32 %v624, %v758
      %v842 = vsub.f32 %v626, %v761
      %v843 = vsub.f32 %v628, %v761
      %v844 = vsub.f32 %v632, %v764
      %v845 = vsub.f32 %v634, %v764
      %v846 = vsub.f32 %v636, %v767
      %v847 = vsub.f32 %v638, %v767
      %v848 = vsub.f32 %v642, %v770
      %v849 = vsub.f32 %v644, %v770
      %v850 = vsub.f32 %v646, %v773
      %v851 = vsub.f32 %v648, %v773
      %v852 = vsub.f32 %v652, %v776
      %v853 = vsub.f32 %v654, %v776
      %v854 = vsub.f32 %v656, %v779
      %v855 = vsub.f32 %v658, %v779
      %v856 = vsub.f32 %v662, %v782
      %v857 = vsub.f32 %v664, %v782
      %v858 = vsub.f32 %v666, %v785
      %v859 = vsub.f32 %v668, %v785
      %v860 = vsub.f32 %v672, %v788
      %v861 = vsub.f32 %v674, %v788
      %v862 = vsub.f32 %v676, %v791
      %v863 = vsub.f32 %v678, %v791
      %v864 = vsub.f32 %v682, %v794
      %v865 = vsub.f32 %v684, %v794
      %v866 = vsub.f32 %v686, %v797
      %v867 = vsub.f32 %v688, %v797
      %v868 = vsub.f32 %v692, %v800
      %v869 = vsub.f32 %v694, %v800
      %v870 = vsub.f32 %v696, %v803
      %v871 = vsub.f32 %v698, %v803
      %v872 = vsub.f32 %v702, %v806
      %v873 = vsub.f32 %v704, %v806
      %v874 = vsub.f32 %v706, %v809
      %v875 = vsub.f32 %v708, %v809
      %v876 = vsub.f32 %v712, %v812
      %v877 = vsub.f32 %v714, %v812
      %v878 = vsub.f32 %v716, %v815
      %v879 = vsub.f32 %v718, %v815
      %v880 = vmul.f32 %v816, 1.442695
      %v881 = vpow.pop %v880
      %v882 = vmul.f32 %v817, 1.442695
      %v883 = vpow.pop %v882
      %v884 = vmul.f32 %v818, 1.442695
      %v885 = vpow.pop %v884
      %v886 = vmul.f32 %v819, 1.442695
      %v887 = vpow.pop %v886
      %v888 = vmul.f32 %v820, 1.442695
      %v889 = vpow.pop %v888
      %v890 = vmul.f32 %v821, 1.442695
      %v891 = vpow.pop %v890
      %v892 = vmul.f32 %v822, 1.442695
      %v893 = vpow.pop %v892
      %v894 = vmul.f32 %v823, 1.442695
      %v895 = vpow.pop %v894
      %v896 = vmul.f32 %v824, 1.442695
      %v897 = vpow.pop %v896
      %v898 = vmul.f32 %v825, 1.442695
      %v899 = vpow.pop %v898
      %v900 = vmul.f32 %v826, 1.442695
      %v901 = vpow.pop %v900
      %v902 = vmul.f32 %v827, 1.442695
      %v903 = vpow.pop %v902
      %v904 = vmul.f32 %v828, 1.442695
      %v905 = vpow.pop %v904
      %v906 = vmul.f32 %v829, 1.442695
      %v907 = vpow.pop %v906
      %v908 = vmul.f32 %v830, 1.442695
      %v909 = vpow.pop %v908
      %v910 = vmul.f32 %v831, 1.442695
      %v911 = vpow.pop %v910
      %v912 = vmul.f32 %v832, 1.442695
      %v913 = vpow.pop %v912
      %v914 = vmul.f32 %v833, 1.442695
      %v915 = vpow.pop %v914
      %v916 = vmul.f32 %v834, 1.442695
      %v917 = vpow.pop %v916
      %v918 = vmul.f32 %v835, 1.442695
      %v919 = vpow.pop %v918
      %v920 = vmul.f32 %v836, 1.442695
      %v921 = vpow.pop %v920
      %v922 = vmul.f32 %v837, 1.442695
      %v923 = vpow.pop %v922
      %v924 = vmul.f32 %v838, 1.442695
      %v925 = vpow.pop %v924
      %v926 = vmul.f32 %v839, 1.442695
      %v927 = vpow.pop %v926
      %v928 = vmul.f32 %v840, 1.442695
      %v929 = vpow.pop %v928
      %v930 = vmul.f32 %v841, 1.442695
      %v931 = vpow.pop %v930
      %v932 = vmul.f32 %v842, 1.442695
      %v933 = vpow.pop %v932
      %v934 = vmul.f32 %v843, 1.442695
      %v935 = vpow.pop %v934
      %v936 = vmul.f32 %v844, 1.442695
      %v937 = vpow.pop %v936
      %v938 = vmul.f32 %v845, 1.442695
      %v939 = vpow.pop %v938
      %v940 = vmul.f32 %v846, 1.442695
      %v941 = vpow.pop %v940
      %v942 = vmul.f32 %v847, 1.442695
      %v943 = vpow.pop %v942
      %v944 = vmul.f32 %v848, 1.442695
      %v945 = vpow.pop %v944
      %v946 = vmul.f32 %v849, 1.442695
      %v947 = vpow.pop %v946
      %v948 = vmul.f32 %v850, 1.442695
      %v949 = vpow.pop %v948
      %v950 = vmul.f32 %v851, 1.442695
      %v951 = vpow.pop %v950
      %v952 = vmul.f32 %v852, 1.442695
      %v953 = vpow.pop %v952
      %v954 = vmul.f32 %v853, 1.442695
      %v955 = vpow.pop %v954
      %v956 = vmul.f32 %v854, 1.442695
      %v957 = vpow.pop %v956
      %v958 = vmul.f32 %v855, 1.442695
      %v959 = vpow.pop %v958
      %v960 = vmul.f32 %v856, 1.442695
      %v961 = vpow.pop %v960
      %v962 = vmul.f32 %v857, 1.442695
      %v963 = vpow.pop %v962
      %v964 = vmul.f32 %v858, 1.442695
      %v965 = vpow.pop %v964
      %v966 = vmul.f32 %v859, 1.442695
      %v967 = vpow.pop %v966
      %v968 = vmul.f32 %v860, 1.442695
      %v969 = vpow.pop %v968
      %v970 = vmul.f32 %v861, 1.442695
      %v971 = vpow.pop %v970
      %v972 = vmul.f32 %v862, 1.442695
      %v973 = vpow.pop %v972
      %v974 = vmul.f32 %v863, 1.442695
      %v975 = vpow.pop %v974
      %v976 = vmul.f32 %v864, 1.442695
      %v977 = vpow.pop %v976
      %v978 = vmul.f32 %v865, 1.442695
      %v979 = vpow.pop %v978
      %v980 = vmul.f32 %v866, 1.442695
      %v981 = vpow.pop %v980
      %v982 = vmul.f32 %v867, 1.442695
      %v983 = vpow.pop %v982
      %v984 = vmul.f32 %v868, 1.442695
      %v985 = vpow.pop %v984
      %v986 = vmul.f32 %v869, 1.442695
      %v987 = vpow.pop %v986
      %v988 = vmul.f32 %v870, 1.442695
      %v989 = vpow.pop %v988
      %v990 = vmul.f32 %v871, 1.442695
      %v991 = vpow.pop %v990
      %v992 = vmul.f32 %v872, 1.442695
      %v993 = vpow.pop %v992
      %v994 = vmul.f32 %v873, 1.442695
      %v995 = vpow.pop %v994
      %v996 = vmul.f32 %v874, 1.442695
      %v997 = vpow.pop %v996
      %v998 = vmul.f32 %v875, 1.442695
      %v999 = vpow.pop %v998
      %v1000 = vmul.f32 %v876, 1.442695
      %v1001 = vpow.pop %v1000
      %v1002 = vmul.f32 %v877, 1.442695
      %v1003 = vpow.pop %v1002
      %v1004 = vmul.f32 %v878, 1.442695
      %v1005 = vpow.pop %v1004
      %v1006 = vmul.f32 %v879, 1.442695
      %v1007 = vpow.pop %v1006
      %v1008 = vadd.f32 %v881, %v883
      %1009 = vadd.xlane.f32.xlu0 %v1008
      %v1010 = vpop.xlane.xlu0 %1009
      %v1011 = vadd.f32 %v885, %v887
      %1012 = vadd.xlane.f32.xlu0 %v1011
      %v1013 = vpop.xlane.xlu0 %1012
      %v1014 = vadd.f32 %v889, %v891
      %1015 = vadd.xlane.f32.xlu0 %v1014
      %v1016 = vpop.xlane.xlu0 %1015
      %v1017 = vadd.f32 %v893, %v895
      %1018 = vadd.xlane.f32.xlu0 %v1017
      %v1019 = vpop.xlane.xlu0 %1018
      %v1020 = vadd.f32 %v897, %v899
      %1021 = vadd.xlane.f32.xlu0 %v1020
      %v1022 = vpop.xlane.xlu0 %1021
      %v1023 = vadd.f32 %v901, %v903
      %1024 = vadd.xlane.f32.xlu0 %v1023
      %v1025 = vpop.xlane.xlu0 %1024
      %v1026 = vadd.f32 %v905, %v907
      %1027 = vadd.xlane.f32.xlu0 %v1026
      %v1028 = vpop.xlane.xlu0 %1027
      %v1029 = vadd.f32 %v909, %v911
      %1030 = vadd.xlane.f32.xlu0 %v1029
      %v1031 = vpop.xlane.xlu0 %1030
      %v1032 = vadd.f32 %v913, %v915
      %1033 = vadd.xlane.f32.xlu0 %v1032
      %v1034 = vpop.xlane.xlu0 %1033
      %v1035 = vadd.f32 %v917, %v919
      %1036 = vadd.xlane.f32.xlu0 %v1035
      %v1037 = vpop.xlane.xlu0 %1036
      %v1038 = vadd.f32 %v921, %v923
      %1039 = vadd.xlane.f32.xlu0 %v1038
      %v1040 = vpop.xlane.xlu0 %1039
      %v1041 = vadd.f32 %v925, %v927
      %1042 = vadd.xlane.f32.xlu0 %v1041
      %v1043 = vpop.xlane.xlu0 %1042
      %v1044 = vadd.f32 %v929, %v931
      %1045 = vadd.xlane.f32.xlu0 %v1044
      %v1046 = vpop.xlane.xlu0 %1045
      %v1047 = vadd.f32 %v933, %v935
      %1048 = vadd.xlane.f32.xlu0 %v1047
      %v1049 = vpop.xlane.xlu0 %1048
      %v1050 = vadd.f32 %v937, %v939
      %1051 = vadd.xlane.f32.xlu0 %v1050
      %v1052 = vpop.xlane.xlu0 %1051
      %v1053 = vadd.f32 %v941, %v943
      %1054 = vadd.xlane.f32.xlu0 %v1053
      %v1055 = vpop.xlane.xlu0 %1054
      %v1056 = vadd.f32 %v945, %v947
      %1057 = vadd.xlane.f32.xlu0 %v1056
      %v1058 = vpop.xlane.xlu0 %1057
      %v1059 = vadd.f32 %v949, %v951
      %1060 = vadd.xlane.f32.xlu0 %v1059
      %v1061 = vpop.xlane.xlu0 %1060
      %v1062 = vadd.f32 %v953, %v955
      %1063 = vadd.xlane.f32.xlu0 %v1062
      %v1064 = vpop.xlane.xlu0 %1063
      %v1065 = vadd.f32 %v957, %v959
      %1066 = vadd.xlane.f32.xlu0 %v1065
      %v1067 = vpop.xlane.xlu0 %1066
      %v1068 = vadd.f32 %v961, %v963
      %1069 = vadd.xlane.f32.xlu0 %v1068
      %v1070 = vpop.xlane.xlu0 %1069
      %v1071 = vadd.f32 %v965, %v967
      %1072 = vadd.xlane.f32.xlu0 %v1071
      %v1073 = vpop.xlane.xlu0 %1072
      %v1074 = vadd.f32 %v969, %v971
      %1075 = vadd.xlane.f32.xlu0 %v1074
      %v1076 = vpop.xlane.xlu0 %1075
      %v1077 = vadd.f32 %v973, %v975
      %1078 = vadd.xlane.f32.xlu0 %v1077
      %v1079 = vpop.xlane.xlu0 %1078
      %v1080 = vadd.f32 %v977, %v979
      %1081 = vadd.xlane.f32.xlu0 %v1080
      %v1082 = vpop.xlane.xlu0 %1081
      %v1083 = vadd.f32 %v981, %v983
      %1084 = vadd.xlane.f32.xlu0 %v1083
      %v1085 = vpop.xlane.xlu0 %1084
      %v1086 = vadd.f32 %v985, %v987
      %1087 = vadd.xlane.f32.xlu0 %v1086
      %v1088 = vpop.xlane.xlu0 %1087
      %v1089 = vadd.f32 %v989, %v991
      %1090 = vadd.xlane.f32.xlu0 %v1089
      %v1091 = vpop.xlane.xlu0 %1090
      %v1092 = vadd.f32 %v993, %v995
      %1093 = vadd.xlane.f32.xlu0 %v1092
      %v1094 = vpop.xlane.xlu0 %1093
      %v1095 = vadd.f32 %v997, %v999
      %1096 = vadd.xlane.f32.xlu0 %v1095
      %v1097 = vpop.xlane.xlu0 %1096
      %v1098 = vadd.f32 %v1001, %v1003
      %1099 = vadd.xlane.f32.xlu0 %v1098
      %v1100 = vpop.xlane.xlu0 %1099
      %v1101 = vadd.f32 %v1005, %v1007
      %1102 = vadd.xlane.f32.xlu0 %v1101
      %v1103 = vpop.xlane.xlu0 %1102
      %v1104 = vrcp.pop %v1010
      %v1105 = vrcp.pop %v1013
      %v1106 = vrcp.pop %v1016
      %v1107 = vrcp.pop %v1019
      %v1108 = vrcp.pop %v1022
      %v1109 = vrcp.pop %v1025
      %v1110 = vrcp.pop %v1028
      %v1111 = vrcp.pop %v1031
      %v1112 = vrcp.pop %v1034
      %v1113 = vrcp.pop %v1037
      %v1114 = vrcp.pop %v1040
      %v1115 = vrcp.pop %v1043
      %v1116 = vrcp.pop %v1046
      %v1117 = vrcp.pop %v1049
      %v1118 = vrcp.pop %v1052
      %v1119 = vrcp.pop %v1055
      %v1120 = vrcp.pop %v1058
      %v1121 = vrcp.pop %v1061
      %v1122 = vrcp.pop %v1064
      %v1123 = vrcp.pop %v1067
      %v1124 = vrcp.pop %v1070
      %v1125 = vrcp.pop %v1073
      %v1126 = vrcp.pop %v1076
      %v1127 = vrcp.pop %v1079
      %v1128 = vrcp.pop %v1082
      %v1129 = vrcp.pop %v1085
      %v1130 = vrcp.pop %v1088
      %v1131 = vrcp.pop %v1091
      %v1132 = vrcp.pop %v1094
      %v1133 = vrcp.pop %v1097
      %v1134 = vrcp.pop %v1100
      %v1135 = vrcp.pop %v1103
      %v1136 = vmul.f32 %v881, %v1104
      %v1137 = vmul.f32 %v883, %v1104
      %v1138 = vmul.f32 %v885, %v1105
      %v1139 = vmul.f32 %v887, %v1105
      %v1140 = vmul.f32 %v889, %v1106
      %v1141 = vmul.f32 %v891, %v1106
      %v1142 = vmul.f32 %v893, %v1107
      %v1143 = vmul.f32 %v895, %v1107
      %v1144 = vmul.f32 %v897, %v1108
      %v1145 = vmul.f32 %v899, %v1108
      %v1146 = vmul.f32 %v901, %v1109
      %v1147 = vmul.f32 %v903, %v1109
      %v1148 = vmul.f32 %v905, %v1110
      %v1149 = vmul.f32 %v907, %v1110
      %v1150 = vmul.f32 %v909, %v1111
      %v1151 = vmul.f32 %v911, %v1111
      %v1152 = vmul.f32 %v913, %v1112
      %v1153 = vmul.f32 %v915, %v1112
      %v1154 = vmul.f32 %v917, %v1113
      %v1155 = vmul.f32 %v919, %v1113
      %v1156 = vmul.f32 %v921, %v1114
      %v1157 = vmul.f32 %v923, %v1114
      %v1158 = vmul.f32 %v925, %v1115
      %v1159 = vmul.f32 %v927, %v1115
      %v1160 = vmul.f32 %v929, %v1116
      %v1161 = vmul.f32 %v931, %v1116
      %v1162 = vmul.f32 %v933, %v1117
      %v1163 = vmul.f32 %v935, %v1117
      %v1164 = vmul.f32 %v937, %v1118
      %v1165 = vmul.f32 %v939, %v1118
      %v1166 = vmul.f32 %v941, %v1119
      %v1167 = vmul.f32 %v943, %v1119
      %v1168 = vmul.f32 %v945, %v1120
      %v1169 = vmul.f32 %v947, %v1120
      %v1170 = vmul.f32 %v949, %v1121
      %v1171 = vmul.f32 %v951, %v1121
      %v1172 = vmul.f32 %v953, %v1122
      %v1173 = vmul.f32 %v955, %v1122
      %v1174 = vmul.f32 %v957, %v1123
      %v1175 = vmul.f32 %v959, %v1123
      %v1176 = vmul.f32 %v961, %v1124
      %v1177 = vmul.f32 %v963, %v1124
      %v1178 = vmul.f32 %v965, %v1125
      %v1179 = vmul.f32 %v967, %v1125
      %v1180 = vmul.f32 %v969, %v1126
      %v1181 = vmul.f32 %v971, %v1126
      %v1182 = vmul.f32 %v973, %v1127
      %v1183 = vmul.f32 %v975, %v1127
      %v1184 = vmul.f32 %v977, %v1128
      %v1185 = vmul.f32 %v979, %v1128
      %v1186 = vmul.f32 %v981, %v1129
      %v1187 = vmul.f32 %v983, %v1129
      %v1188 = vmul.f32 %v985, %v1130
      %v1189 = vmul.f32 %v987, %v1130
      %v1190 = vmul.f32 %v989, %v1131
      %v1191 = vmul.f32 %v991, %v1131
      %v1192 = vmul.f32 %v993, %v1132
      %v1193 = vmul.f32 %v995, %v1132
      %v1194 = vmul.f32 %v997, %v1133
      %v1195 = vmul.f32 %v999, %v1133
      %v1196 = vmul.f32 %v1001, %v1134
      %v1197 = vmul.f32 %v1003, %v1134
      %v1198 = vmul.f32 %v1005, %v1135
      %v1199 = vmul.f32 %v1007, %v1135
      %v1200 = vpack.c.bf16 %v1138, %v1136
      %v1201 = vpack.c.bf16 %v1139, %v1137
      %v1202 = vpack.c.bf16 %v1142, %v1140
      %v1203 = vpack.c.bf16 %v1143, %v1141
      %v1204 = vpack.c.bf16 %v1146, %v1144
      %v1205 = vpack.c.bf16 %v1147, %v1145
      %v1206 = vpack.c.bf16 %v1150, %v1148
      %v1207 = vpack.c.bf16 %v1151, %v1149
      %v1208 = vpack.c.bf16 %v1154, %v1152
      %v1209 = vpack.c.bf16 %v1155, %v1153
      %v1210 = vpack.c.bf16 %v1158, %v1156
      %v1211 = vpack.c.bf16 %v1159, %v1157
      %v1212 = vpack.c.bf16 %v1162, %v1160
      %v1213 = vpack.c.bf16 %v1163, %v1161
      %v1214 = vpack.c.bf16 %v1166, %v1164
      %v1215 = vpack.c.bf16 %v1167, %v1165
      %v1216 = vpack.c.bf16 %v1170, %v1168
      %v1217 = vpack.c.bf16 %v1171, %v1169
      %v1218 = vpack.c.bf16 %v1174, %v1172
      %v1219 = vpack.c.bf16 %v1175, %v1173
      %v1220 = vpack.c.bf16 %v1178, %v1176
      %v1221 = vpack.c.bf16 %v1179, %v1177
      %v1222 = vpack.c.bf16 %v1182, %v1180
      %v1223 = vpack.c.bf16 %v1183, %v1181
      %v1224 = vpack.c.bf16 %v1186, %v1184
      %v1225 = vpack.c.bf16 %v1187, %v1185
      %v1226 = vpack.c.bf16 %v1190, %v1188
      %v1227 = vpack.c.bf16 %v1191, %v1189
      %v1228 = vpack.c.bf16 %v1194, %v1192
      %v1229 = vpack.c.bf16 %v1195, %v1193
      %v1230 = vpack.c.bf16 %v1198, %v1196
      %v1231 = vpack.c.bf16 %v1199, %v1197
      %v1234 = vunpack.c.l.b16 %v424
      %v1235 = vunpack.c.h.b16 %v424
      %v1236 = vunpack.c.l.b16 %v425
      %v1237 = vunpack.c.h.b16 %v425
      %v1238 = vpack.c.b16 %v1236, %v1234
      %v1239 = vpack.c.b16 %v1237, %v1235
      %1242 = vmatprep.subr.bf16.mxu0 %v1201
      %1243 = vmatpush1.bf16.xpose.msra.mxu0 %v1200
      %1244 = vmatprep.subr.bf16.mxu0 %v1203
      %1245 = vmatpush1.bf16.xpose.msra.mxu0 %v1202
      %1246 = vmatprep.subr.bf16.mxu0 %v1205
      %1247 = vmatpush1.bf16.xpose.msra.mxu0 %v1204
      %1248 = vmatprep.subr.bf16.mxu0 %v1207
      %1249 = vmatpush1.bf16.xpose.msra.mxu0 %v1206
      %1250 = vmatprep.subr.bf16.mxu0 %v1209
      %1251 = vmatpush1.bf16.xpose.msra.mxu0 %v1208
      %1252 = vmatprep.subr.bf16.mxu0 %v1211
      %1253 = vmatpush1.bf16.xpose.msra.mxu0 %v1210
      %1254 = vmatprep.subr.bf16.mxu0 %v1213
      %1255 = vmatpush1.bf16.xpose.msra.mxu0 %v1212
      %1256 = vmatprep.subr.bf16.mxu0 %v1215
      %1257 = vmatpush1.bf16.xpose.msra.mxu0 %v1214
      %1258 = vmatprep.subr.bf16.mxu0 %v1217
      %1259 = vmatpush1.bf16.xpose.msra.mxu0 %v1216
      %1260 = vmatprep.subr.bf16.mxu0 %v1219
      %1261 = vmatpush1.bf16.xpose.msra.mxu0 %v1218
      %1262 = vmatprep.subr.bf16.mxu0 %v1221
      %1263 = vmatpush1.bf16.xpose.msra.mxu0 %v1220
      %1264 = vmatprep.subr.bf16.mxu0 %v1223
      %1265 = vmatpush1.bf16.xpose.msra.mxu0 %v1222
      %1266 = vmatprep.subr.bf16.mxu0 %v1225
      %1267 = vmatpush1.bf16.xpose.msra.mxu0 %v1224
      %1268 = vmatprep.subr.bf16.mxu0 %v1227
      %1269 = vmatpush1.bf16.xpose.msra.mxu0 %v1226
      %1270 = vmatprep.subr.bf16.mxu0 %v1229
      %1271 = vmatpush1.bf16.xpose.msra.mxu0 %v1228
      %1272 = vmatprep.subr.bf16.mxu0 %v1231
      %1273 = vmatpush1.bf16.xpose.msra.mxu0 %v1230
      %1274 = vmatprep.mubr.bf16.mxu0 %v1239
      %1275 = vmatmul.mubr.bf16.gmra.mrb[0].mxu0 %v1238
      %v1276 = vpop.f32.mrb[0].mxu0
      %v1277 = vadd.f32 0.0, %v1276
      %v1278 = vpop.f32.mrb[0].mxu0
      %v1279 = vadd.f32 0.0, %v1278
      %v1280 = vpop.f32.mrb[0].mxu0
      %v1281 = vadd.f32 0.0, %v1280
      %v1282 = vpop.f32.mrb[0].mxu0
      %v1283 = vadd.f32 0.0, %v1282
      %1284 = vdwg.mxu0
      %v1285 = vld [vmem:[%s4] sm:$0xff]
      %v1286 = vld [vmem:[%s4 + $0x8] sm:$0xff]
      %v1287 = vld [vmem:[%s4 + $0x10] sm:$0xff]
      %v1288 = vld [vmem:[%s4 + $0x18] sm:$0xff]
      %v1290 = vsel %vm478, %v1285, 0
      %v1293 = vsel %vm478, %v1286, 0
      %v1296 = vsel %vm478, %v1287, 0
      %v1299 = vsel %vm478, %v1288, 0
      %1301 = vmatprep.subr.mxu0 %v1279
      %1302 = vmatpush1.msra.mxu0 %v1277
      %1303 = vmatprep.subr.mxu0 %v1283
      %1304 = vmatpush1.msra.mxu0 %v1281
      %1305 = vmatprep.subr.mxu0 0.0
      %1306 = vmatpush1.msra.mxu0 0.0
      %1307 = vmatprep.subr.mxu0 0.0
      %1308 = vmatpush1.msra.mxu0 0.0
      %1309 = vmatprep.subr.mxu0 0.0
      %1310 = vmatpush1.msra.mxu0 0.0
      %1311 = vmatprep.subr.mxu0 0.0
      %1312 = vmatpush1.msra.mxu0 0.0
      %1313 = vmatprep.subr.mxu0 0.0
      %1314 = vmatpush1.msra.mxu0 0.0
      %1315 = vmatprep.subr.mxu0 0.0
      %1316 = vmatpush1.msra.mxu0 0.0
      %1317 = vmatprep.subr.mxu0 0.0
      %1318 = vmatpush1.msra.mxu0 0.0
      %1319 = vmatprep.subr.mxu0 0.0
      %1320 = vmatpush1.msra.mxu0 0.0
      %1321 = vmatprep.subr.mxu0 0.0
      %1322 = vmatpush1.msra.mxu0 0.0
      %1323 = vmatprep.subr.mxu0 0.0
      %1324 = vmatpush1.msra.mxu0 0.0
      %1325 = vmatprep.subr.mxu0 0.0
      %1326 = vmatpush1.msra.mxu0 0.0
      %1327 = vmatprep.subr.mxu0 0.0
      %1328 = vmatpush1.msra.mxu0 0.0
      %1329 = vmatprep.subr.mxu0 0.0
      %1330 = vmatpush1.msra.mxu0 0.0
      %1331 = vmatprep.subr.mxu0 0.0
      %1332 = vmatpush1.msra.mxu0 0.0
      %1333 = vmatprep.subr.mxu0 0.0
      %1334 = vmatpush1.msra.mxu0 0.0
      %1335 = vmatprep.subr.mxu0 0.0
      %1336 = vmatpush1.msra.mxu0 0.0
      %1337 = vmatprep.subr.mxu0 0.0
      %1338 = vmatpush1.msra.mxu0 0.0
      %1339 = vmatprep.subr.mxu0 0.0
      %1340 = vmatpush1.msra.mxu0 0.0
      %1341 = vmatprep.subr.mxu0 0.0
      %1342 = vmatpush1.msra.mxu0 0.0
      %1343 = vmatprep.subr.mxu0 0.0
      %1344 = vmatpush1.msra.mxu0 0.0
      %1345 = vmatprep.subr.mxu0 0.0
      %1346 = vmatpush1.msra.mxu0 0.0
      %1347 = vmatprep.subr.mxu0 0.0
      %1348 = vmatpush1.msra.mxu0 0.0
      %1349 = vmatprep.subr.mxu0 0.0
      %1350 = vmatpush1.msra.mxu0 0.0
      %1351 = vmatprep.subr.mxu0 0.0
      %1352 = vmatpush1.msra.mxu0 0.0
      %1353 = vmatprep.subr.mxu0 0.0
      %1354 = vmatpush1.msra.mxu0 0.0
      %1355 = vmatprep.subr.mxu0 0.0
      %1356 = vmatpush1.msra.mxu0 0.0
      %1357 = vmatprep.subr.mxu0 0.0
      %1358 = vmatpush1.msra.mxu0 0.0
      %1359 = vmatprep.subr.mxu0 0.0
      %1360 = vmatpush1.msra.mxu0 0.0
      %1361 = vmatprep.subr.mxu0 0.0
      %1362 = vmatpush1.msra.mxu0 0.0
      %1363 = vmatprep.subr.mxu0 0.0
      %1364 = vmatpush1.msra.mxu0 0.0
      %1365 = vmatprep.mubr.f32.mxu0 0.0
      %1366 = vmatmul.mubr.f32.gmra.mrb[0].mxu0 %v1290
      %v1367 = vpop.f32.mrb[0].mxu0
      %v1368 = vadd.f32 0.0, %v1367
      %v1369 = vpop.f32.mrb[0].mxu0
      %v1370 = vadd.f32 0.0, %v1369
      %1371 = vmatprep.mubr.f32.mxu0 0.0
      %1372 = vmatmul.mubr.f32.gmra.mrb[0].mxu0 %v1293
      %v1373 = vpop.f32.mrb[0].mxu0
      %v1374 = vadd.f32 0.0, %v1373
      %v1375 = vpop.f32.mrb[0].mxu0
      %v1376 = vadd.f32 0.0, %v1375
      %1377 = vmatprep.mubr.f32.mxu0 0.0
      %1378 = vmatmul.mubr.f32.gmra.mrb[0].mxu0 %v1296
      %v1379 = vpop.f32.mrb[0].mxu0
      %v1380 = vadd.f32 0.0, %v1379
      %v1381 = vpop.f32.mrb[0].mxu0
      %v1382 = vadd.f32 0.0, %v1381
      %1383 = vmatprep.mubr.f32.mxu0 0.0
      %1384 = vmatmul.mubr.f32.gmra.mrb[0].mxu0 %v1299
      %v1385 = vpop.f32.mrb[0].mxu0
      %v1386 = vadd.f32 0.0, %v1385
      %v1387 = vpop.f32.mrb[0].mxu0
      %v1388 = vadd.f32 0.0, %v1387
      %1389 = vdwg.mxu0
      %v1390 = vld [vmem:[%s5] sm:$0xff]
      %v1391 = vld [vmem:[%s5 + $0x8] sm:$0xff]
      %v1392 = vld [vmem:[%s5 + $0x10] sm:$0xff]
      %v1393 = vld [vmem:[%s5 + $0x18] sm:$0xff]
      %1395 = vset.pattern.permute.xlu0 0
      %1396 = vperm.xlu0 %1395, %v1390
      %v1397 = vpop.permute.xlu0 %1396
      %1400 = vset.pattern.permute.xlu0 0
      %1401 = vperm.xlu0 %1400, %v1391
      %v1402 = vpop.permute.xlu0 %1401
      %1405 = vset.pattern.permute.xlu0 0
      %1406 = vperm.xlu0 %1405, %v1392
      %v1407 = vpop.permute.xlu0 %1406
      %1410 = vset.pattern.permute.xlu0 0
      %1411 = vperm.xlu0 %1410, %v1393
      %v1412 = vpop.permute.xlu0 %1411
      %v1414 = vmul.f32 %v1368, %v1397
      %v1415 = vmul.f32 %v1370, %v1397
      %v1416 = vmul.f32 %v1374, %v1402
      %v1417 = vmul.f32 %v1376, %v1402
      %v1418 = vmul.f32 %v1380, %v1407
      %v1419 = vmul.f32 %v1382, %v1407
      %v1420 = vmul.f32 %v1386, %v1412
      %v1421 = vmul.f32 %v1388, %v1412
      %v1422 = vld [vmem:[%s6] sm:$0xff]
      %v1423 = vld [vmem:[%s6 + $0x8] sm:$0xff]
      %v1424 = vld [vmem:[%s6 + $0x10] sm:$0xff]
      %v1425 = vld [vmem:[%s6 + $0x18] sm:$0xff]
      %1427 = vset.pattern.permute.xlu0 0
      %1428 = vperm.xlu0 %1427, %v1422
      %v1429 = vpop.permute.xlu0 %1428
      %1432 = vset.pattern.permute.xlu0 0
      %1433 = vperm.xlu0 %1432, %v1423
      %v1434 = vpop.permute.xlu0 %1433
      %1437 = vset.pattern.permute.xlu0 0
      %1438 = vperm.xlu0 %1437, %v1424
      %v1439 = vpop.permute.xlu0 %1438
      %1442 = vset.pattern.permute.xlu0 0
      %1443 = vperm.xlu0 %1442, %v1425
      %v1444 = vpop.permute.xlu0 %1443
      %v1446 = vadd.f32 %v1414, %v1429
      %v1447 = vadd.f32 %v1415, %v1429
      %v1448 = vadd.f32 %v1416, %v1434
      %v1449 = vadd.f32 %v1417, %v1434
      %v1450 = vadd.f32 %v1418, %v1439
      %v1451 = vadd.f32 %v1419, %v1439
      %v1452 = vadd.f32 %v1420, %v1444
      %v1453 = vadd.f32 %v1421, %v1444
      %v1454 = vld [vmem:[%s408] sm:$0xff]
      %v1455 = vld [vmem:[%s408 + $0x8] sm:$0xff]
      %v1456 = vld [vmem:[%s408 + $0x10] sm:$0xff]
      %v1457 = vld [vmem:[%s408 + $0x18] sm:$0xff]
      %v1458 = vld [vmem:[%s408 + $0x20] sm:$0xff]
      %v1459 = vld [vmem:[%s408 + $0x28] sm:$0xff]
      %v1460 = vld [vmem:[%s408 + $0x30] sm:$0xff]
      %v1461 = vld [vmem:[%s408 + $0x38] sm:$0xff]
      %v1462 = vadd.f32 %v1446, %v1454
      %v1463 = vadd.f32 %v1447, %v1455
      %v1464 = vadd.f32 %v1448, %v1456
      %v1465 = vadd.f32 %v1449, %v1457
      %v1466 = vadd.f32 %v1450, %v1458
      %v1467 = vadd.f32 %v1451, %v1459
      %v1468 = vadd.f32 %v1452, %v1460
      %v1469 = vadd.f32 %v1453, %v1461
      %v1470 = vld [vmem:[%s7] sm:$0x1]
      %vm1471 = vcmask 261120
      %v1473 = vsel %vm1471, %v1470, 0
      %1475 = vmatprep.subr.mxu0 %v1463
      %1476 = vmatpush1.msra.mxu0 %v1462
      %1477 = vmatprep.subr.mxu0 %v1465
      %1478 = vmatpush1.msra.mxu0 %v1464
      %1479 = vmatprep.subr.mxu0 %v1467
      %1480 = vmatpush1.msra.mxu0 %v1466
      %1481 = vmatprep.subr.mxu0 %v1469
      %1482 = vmatpush1.msra.mxu0 %v1468
      %1483 = vmatprep.subr.mxu0 0.0
      %1484 = vmatpush1.msra.mxu0 0.0
      %1485 = vmatprep.subr.mxu0 0.0
      %1486 = vmatpush1.msra.mxu0 0.0
      %1487 = vmatprep.subr.mxu0 0.0
      %1488 = vmatpush1.msra.mxu0 0.0
      %1489 = vmatprep.subr.mxu0 0.0
      %1490 = vmatpush1.msra.mxu0 0.0
      %1491 = vmatprep.subr.mxu0 0.0
      %1492 = vmatpush1.msra.mxu0 0.0
      %1493 = vmatprep.subr.mxu0 0.0
      %1494 = vmatpush1.msra.mxu0 0.0
      %1495 = vmatprep.subr.mxu0 0.0
      %1496 = vmatpush1.msra.mxu0 0.0
      %1497 = vmatprep.subr.mxu0 0.0
      %1498 = vmatpush1.msra.mxu0 0.0
      %1499 = vmatprep.subr.mxu0 0.0
      %1500 = vmatpush1.msra.mxu0 0.0
      %1501 = vmatprep.subr.mxu0 0.0
      %1502 = vmatpush1.msra.mxu0 0.0
      %1503 = vmatprep.subr.mxu0 0.0
      %1504 = vmatpush1.msra.mxu0 0.0
      %1505 = vmatprep.subr.mxu0 0.0
      %1506 = vmatpush1.msra.mxu0 0.0
      %1507 = vmatprep.subr.mxu0 0.0
      %1508 = vmatpush1.msra.mxu0 0.0
      %1509 = vmatprep.subr.mxu0 0.0
      %1510 = vmatpush1.msra.mxu0 0.0
      %1511 = vmatprep.subr.mxu0 0.0
      %1512 = vmatpush1.msra.mxu0 0.0
      %1513 = vmatprep.subr.mxu0 0.0
      %1514 = vmatpush1.msra.mxu0 0.0
      %1515 = vmatprep.subr.mxu0 0.0
      %1516 = vmatpush1.msra.mxu0 0.0
      %1517 = vmatprep.subr.mxu0 0.0
      %1518 = vmatpush1.msra.mxu0 0.0
      %1519 = vmatprep.subr.mxu0 0.0
      %1520 = vmatpush1.msra.mxu0 0.0
      %1521 = vmatprep.subr.mxu0 0.0
      %1522 = vmatpush1.msra.mxu0 0.0
      %1523 = vmatprep.subr.mxu0 0.0
      %1524 = vmatpush1.msra.mxu0 0.0
      %1525 = vmatprep.subr.mxu0 0.0
      %1526 = vmatpush1.msra.mxu0 0.0
      %1527 = vmatprep.subr.mxu0 0.0
      %1528 = vmatpush1.msra.mxu0 0.0
      %1529 = vmatprep.subr.mxu0 0.0
      %1530 = vmatpush1.msra.mxu0 0.0
      %1531 = vmatprep.subr.mxu0 0.0
      %1532 = vmatpush1.msra.mxu0 0.0
      %1533 = vmatprep.subr.mxu0 0.0
      %1534 = vmatpush1.msra.mxu0 0.0
      %1535 = vmatprep.subr.mxu0 0.0
      %1536 = vmatpush1.msra.mxu0 0.0
      %1537 = vmatprep.subr.mxu0 0.0
      %1538 = vmatpush1.msra.mxu0 0.0
      %1539 = vmatprep.mubr.f32.mxu0 0.0
      %1540 = vmatmul.mubr.f32.gmra.mrb[0].mxu0 %v1473
      %v1541 = vpop.f32.mrb[0].mxu0
      %v1542 = vadd.f32 0.0, %v1541
      %v1543 = vpop.f32.mrb[0].mxu0
      %v1544 = vadd.f32 0.0, %v1543
      %1545 = vdwg.mxu0
      %v1548 = vcombine.low %v1542, %v1544
      %v1550 = vunpack.c.l.s4 1966171168
      %v1551 = vunpack.c.0.s8 %v1550
      %v1552 = vlaneseq
      %v1553 = vshrl.u32 %v1552, 7
      %v1554 = vsub.s32 %v1551, %v1553
      %v1555 = vrot.slane %v1548, %v1554
      %v1557 = vunpack.c.l.s4 1966171168
      %v1558 = vunpack.c.0.s8 %v1557
      %v1559 = vlaneseq
      %v1560 = vshrl.u32 %v1559, 7
      %v1561 = vsub.s32 %v1558, %v1560
      %v1562 = vrot.slane %v1555, %v1561
      %v1564 = vlaneseq
      %vm1565 = vcmp.ge.s32.totalorder %v1564, 0
      %vm1566 = vcmp.lt.s32.totalorder %v1564, 256
      %vm1567 = vmand %vm1565, %vm1566
      %1568 = vst.msk [vmem:[%s417] sm:$0x3] %vm1567, %v1562
      %s1569 = smul.u32 2, %s24
      %p1570 = scmp.lt.s32.totalorder %s23, 1
      %s1571 = scalar_select %p1570, %s23, 1
      %p1572 = scmp.lt.s32.totalorder %s1569, 1
      %s1573 = scalar_select %p1572, %s1569, 1
      %s1574 = smul.addr %s1571, 2
      %s1575 = sadd.s32 %s1573, %s1574
      %s1576 = scalar_lea.vmem %s8, %s1575
      // Predicated region
      $region53: #{nl_subnet_forward.3} parent=51 // pred_check
        %p1577 = pneg %p243
      $region54: #{nl_subnet_forward.3} parent=51 // pred_check_branch
        %1579 = sbr.rel (%p1577) target = $region56
      $region55: #{nl_subnet_forward.3} parent=51 // pred_region
        %s1580 = smul.u32 2, %s24
      $region56: #{nl_subnet_forward.3} parent=51 // pred_fallthru
        _
    $region52: #{nl_subnet_forward.3} parent=5 // pred_fallthru
      _
    %p1581 = scmp.le.s32.totalorder 2, %s14
    // Predicated region
    $region57: #{nl_subnet_forward.3} parent=5 // pred_check
      %p1582 = pneg %p1581
    $region58: #{nl_subnet_forward.3} parent=5 // pred_check_branch
      %1584 = sbr.rel (%p1582) target = $region60
    $region59: #{nl_subnet_forward.3} parent=5 // pred_region
      %s1585 = ssub.s32 %s14, 2
      // Predicated region
      $region61: #{nl_subnet_forward.3} parent=59 // pred_check
        %p1586 = pneg %p249
      $region62: #{nl_subnet_forward.3} parent=59 // pred_check_branch
        %1588 = sbr.rel (%p1586) target = $region64
      $region63: #{nl_subnet_forward.3} parent=59 // pred_region
        %s1589 = smul.u32 2, %s26
        %p1590 = scmp.lt.s32.totalorder %s25, 1
        %s1591 = scalar_select %p1590, %s25, 1
        %p1592 = scmp.lt.s32.totalorder %s1589, 1
        %s1593 = scalar_select %p1592, %s1589, 1
        %s1594 = smul.addr %s1591, 2
        %s1595 = sadd.s32 %s1593, %s1594
        %s1596 = scalar_lea.vmem %s8, %s1595
      $region64: #{nl_subnet_forward.3} parent=59 // pred_fallthru
        _
    $region60: #{nl_subnet_forward.3} parent=5 // pred_fallthru
      _
  $region6: #{nl_subnet_forward.3} parent=0 // loop_footer
    %s18 = sadd.s32 1, %s14
  $region7: #{nl_subnet_forward.3} parent=0 // loop_footer_branch
    %13 = sbr.rel target = $region3
  $region8: #{nl_subnet_forward.3} parent=0 // loop_exit
    _

</llo_original>
